<compile_context>
chip_gen: v5e
topology: v5e:2x2
jax: 0.10.0
libtpu: 0.0.40
codegen_flags: <defaults>
</compile_context>

<pallas_src>
import numpy as np
import jax
import jax.numpy as jnp
from jax.experimental import pallas as pl
from jax.experimental.pallas import tpu as pltpu

# ConvTranspose2d(k=4, s=2, p=1): output row oy = 2*iy - 1 + ky, i.e.
#   oy even (oy = 2r)   -> (ky=1, dy=0), (ky=3, dy=-1)     with iy = r + dy
#   oy odd  (oy = 2r+1) -> (ky=2, dy=0), (ky=0, dy=+1)
_PARITY_TERMS = {0: ((1, 0), (3, -1)), 1: ((2, 0), (0, 1))}
_PARITIES = ((0, 0), (0, 1), (1, 0), (1, 1))          # p = 2*py + px
_SHIFTS = tuple((dy, dx) for dy in (-1, 0, 1) for dx in (-1, 0, 1)
                if (dy, dx) != (0, 0))
_SHIFT_IDX = {s: i for i, s in enumerate(_SHIFTS)}


def _make_kernel(W):
    """Kernel factory; W (image width) is needed for the flat-spatial shifts."""

    def kernel(x_ref, w1_ref, s1_ref, b1_ref, w2_ref, s2_ref, b2_ref,
               w3_ref, s3_ref, b3_ref, mask_ref, out_ref):
        HW = x_ref.shape[2]

        # ---- stage 1: 1x1 conv (+ folded BN) + ReLU, channels-first -------
        x = x_ref[0]                                              # (Cin, HW)
        h1 = jnp.dot(w1_ref[...], x, preferred_element_type=jnp.float32)
        h1 = jnp.maximum(h1 * s1_ref[...] + b1_ref[...], 0.0)     # (Cmid, HW)

        # ---- shifted + edge-masked copies of h1 ----------------------------
        # shifted(dy,dx)[c, r*W+s] = h1[c, (r+dy)*W + (s+dx)]  (0 if OOB).
        # The shift is a lane rotation of the flat spatial axis; the wrapped /
        # out-of-range positions are zeroed by a precomputed host-side mask.
        def shifted(dy, dx):
            if dy == 0 and dx == 0:
                return h1
            s = dy * W + dx
            v = jnp.concatenate([h1[:, s:], h1[:, :s]], axis=1)   # pull by s
            return v * mask_ref[_SHIFT_IDX[(dy, dx)]]             # (1, HW) bcast

        views = {(dy, dx): shifted(dy, dx)
                 for dy in (-1, 0, 1) for dx in (-1, 0, 1)}

        # ---- stage 2: ConvTranspose2d(k=4,s=2,p=1) as 4 parity matmuls -----
        #      K is the concatenation of the 4 taps of each parity (K=4*Cmid).
        h2_parts = []
        for p, (py, px) in enumerate(_PARITIES):
            xin = jnp.concatenate(
                [views[(dy, dx)]
                 for (_ky, dy) in _PARITY_TERMS[py]
                 for (_kx, dx) in _PARITY_TERMS[px]], axis=0)     # (4*Cmid, HW)
            h2_parts.append(jnp.dot(w2_ref[p], xin,
                                    preferred_element_type=jnp.float32))

        # single epilogue over all 4 parities (folded ConvT bias + BN + ReLU)
        acc2 = jnp.concatenate(h2_parts, axis=1)                  # (Cmid, 4*HW)
        h2 = jnp.maximum(acc2 * s2_ref[...] + b2_ref[...], 0.0)

        # ---- stage 3: 1x1 conv (+ folded BN) + ReLU, batched over parities -
        h3 = jnp.dot(w3_ref[...], h2, preferred_element_type=jnp.float32)
        h3 = jnp.maximum(h3 * s3_ref[...] + b3_ref[...], 0.0)     # (Cout, 4*HW)

        # lane-dense stores: one (Cout, HW) slab per parity
        for p in range(4):
            out_ref[0, p] = h3[:, p * HW:(p + 1) * HW]

    return kernel


def _shift_masks(H, W):
    """Per-shift validity masks over the flattened (row-major) spatial axis."""
    yy, xx = np.meshgrid(np.arange(H), np.arange(W), indexing="ij")
    yy = yy.reshape(-1)
    xx = xx.reshape(-1)
    m = np.zeros((len(_SHIFTS), 1, H * W), np.float32)
    for i, (dy, dx) in enumerate(_SHIFTS):
        ok = ((yy + dy >= 0) & (yy + dy < H) &
              (xx + dx >= 0) & (xx + dx < W))
        m[i, 0, :] = ok.astype(np.float32)
    return jnp.asarray(m)


def decoder_block(x_nchw, params, skip_nchw=None):
    """x_nchw: (N, Cin, H, W) float32; skip_nchw: (N, Cout, 2H, 2W) or None."""
    (w1, s1, b1, wt, s2, b2, w3, s3, b3) = params
    N, Cin, H, W = x_nchw.shape
    Cmid = w1.shape[1]
    Cout = w3.shape[1]
    HW = H * W

    # ---- repack parameters into channels-first kernel layouts (tiny) -------
    w1_k = jnp.asarray(w1, jnp.float32).T                         # (Cmid, Cin)
    w3_k = jnp.asarray(w3, jnp.float32).T                         # (Cout, Cmid)
    # per-parity weight with the 4 taps concatenated along K (matches kernel order)
    w2_k = jnp.stack([
        jnp.concatenate([jnp.asarray(wt[ky, kx], jnp.float32).T
                         for (ky, _dy) in _PARITY_TERMS[py]
                         for (kx, _dx) in _PARITY_TERMS[px]], axis=1)
        for (py, px) in _PARITIES])                               # (4, Cmid, 4*Cmid)

    def col(v):
        return jnp.asarray(v, jnp.float32).reshape(-1, 1)         # (C, 1)

    s1_k, b1_k = col(s1), col(b1)
    s2_k, b2_k = col(s2), col(b2)
    s3_k, b3_k = col(s3), col(b3)
    masks = _shift_masks(H, W)                                    # (8, 1, HW)

    # native NCHW input, only a free reshape (no HBM relayout)
    x = x_nchw.astype(jnp.float32).reshape(N, Cin, HW)

    def whole(a):
        return pl.BlockSpec(a.shape, lambda n, _nd=a.ndim: (0,) * _nd)

    out4 = pl.pallas_call(
        _make_kernel(W),
        out_shape=jax.ShapeDtypeStruct((N, 4, Cout, HW), jnp.float32),
        grid=(N,),
        in_specs=[
            pl.BlockSpec((1, Cin, HW), lambda n: (n, 0, 0)),
            whole(w1_k), whole(s1_k), whole(b1_k),
            whole(w2_k), whole(s2_k), whole(b2_k),
            whole(w3_k), whole(s3_k), whole(b3_k),
            whole(masks),
        ],
        out_specs=pl.BlockSpec((1, 4, Cout, HW), lambda n: (n, 0, 0, 0)),
        compiler_params=pltpu.CompilerParams(
            dimension_semantics=("parallel",),
            vmem_limit_bytes=64 * 1024 * 1024),
    )(x, w1_k, s1_k, b1_k, w2_k, s2_k, b2_k, w3_k, s3_k, b3_k, masks)

    # interleave parity sub-grids and convert to NCHW in ONE fused XLA
    # transpose; the skip add fuses into the same pass (no zeros streamed,
    # no skip relayout, no extra HBM pass).
    out = out4.reshape(N, 2, 2, Cout, H, W)
    out = jnp.transpose(out, (0, 3, 4, 1, 5, 2)).reshape(N, Cout, 2 * H, 2 * W)
    if skip_nchw is not None:
        out = out + skip_nchw.astype(jnp.float32)
    return out


def make_params(key, Cin, Cout):
    """Deterministic synthetic parameters with BN folded into scale/bias."""
    Cmid = Cin // 4
    eps = 1e-5
    ks = jax.random.split(key, 16)

    w1 = 0.2 * jax.random.normal(ks[0], (Cin, Cmid), jnp.float32)
    wt_pt = 0.2 * jax.random.normal(ks[1], (Cmid, Cmid, 4, 4), jnp.float32)
    wt = jnp.transpose(wt_pt, (2, 3, 0, 1))            # (4, 4, Cmid_in, Cmid_out)
    bt = 0.1 * jax.random.normal(ks[2], (Cmid,), jnp.float32)
    w3 = 0.2 * jax.random.normal(ks[3], (Cmid, Cout), jnp.float32)

    def bn(kg, kb, km, kv, C):
        gamma = jax.random.uniform(kg, (C,), jnp.float32, 0.5, 1.5)
        beta = 0.1 * jax.random.normal(kb, (C,), jnp.float32)
        mean = 0.1 * jax.random.normal(km, (C,), jnp.float32)
        var = jax.random.uniform(kv, (C,), jnp.float32, 0.5, 1.5)
        return gamma, beta, mean, var

    g1, be1, m1, v1 = bn(ks[4], ks[5], ks[6], ks[7], Cmid)
    g2, be2, m2, v2 = bn(ks[8], ks[9], ks[10], ks[11], Cmid)
    g3, be3, m3, v3 = bn(ks[12], ks[13], ks[14], ks[15], Cout)

    s1 = g1 / jnp.sqrt(v1 + eps)
    b1 = be1 - m1 * s1
    s2 = g2 / jnp.sqrt(v2 + eps)
    b2 = (bt - m2) * s2 + be2        # ConvT bias folded together with BN
    s3 = g3 / jnp.sqrt(v3 + eps)
    b3 = be3 - m3 * s3

    return (w1, s1.reshape(1, -1), b1.reshape(1, -1),
            wt, s2.reshape(1, -1), b2.reshape(1, -1),
            w3, s3.reshape(1, -1), b3.reshape(1, -1))


def ref_forward(x, params, skip):
    """Pure numpy reference (explicit transposed-conv scatter)."""
    (w1, s1, b1, wt, s2, b2, w3, s3, b3) = [np.asarray(p) for p in params]
    s1, b1, s2, b2, s3, b3 = [v.reshape(-1) for v in (s1, b1, s2, b2, s3, b3)]
    x = np.asarray(x)
    N, Cin, H, W = x.shape
    Cmid = w1.shape[1]

    h1 = np.einsum('nchw,cd->ndhw', x, w1)
    h1 = np.maximum(h1 * s1[None, :, None, None] + b1[None, :, None, None], 0.0)

    out2 = np.zeros((N, Cmid, 2 * H, 2 * W), np.float32)
    for ky in range(4):
        for kx in range(4):
            contrib = np.einsum('ndhw,de->nehw', h1, wt[ky, kx])
            for iy in range(H):
                oy = 2 * iy - 1 + ky
                if not (0 <= oy < 2 * H):
                    continue
                for ix in range(W):
                    ox = 2 * ix - 1 + kx
                    if 0 <= ox < 2 * W:
                        out2[:, :, oy, ox] += contrib[:, :, iy, ix]

    h2 = np.maximum(out2 * s2[None, :, None, None] + b2[None, :, None, None], 0.0)
    h3 = np.einsum('ndhw,de->nehw', h2, w3)
    h3 = np.maximum(h3 * s3[None, :, None, None] + b3[None, :, None, None], 0.0)
    if skip is None:
        return h3
    return h3 + np.asarray(skip)


if __name__ == "__main__":
    N, Cin, Cout, H, W = 2, 32, 16, 16, 16

    key = jax.random.PRNGKey(0)
    kx, kskip, kparams = jax.random.split(key, 3)

    x = jax.random.normal(kx, (N, Cin, H, W), jnp.float32)
    skip = jax.random.normal(kskip, (N, Cout, 2 * H, 2 * W), jnp.float32)
    params = make_params(kparams, Cin, Cout)

    # with skip
    out = jax.block_until_ready(decoder_block(x, params, skip))
    ref = ref_forward(x, params, skip)
    np.testing.assert_allclose(np.asarray(out), ref, rtol=2e-4, atol=1e-4)

    # without skip (no zeros tensor is materialized or streamed)
    out_ns = jax.block_until_ready(decoder_block(x, params, None))
    ref_ns = ref_forward(x, params, None)
    np.testing.assert_allclose(np.asarray(out_ns), ref_ns, rtol=2e-4, atol=1e-4)

    print("KERNEL_OK")
</pallas_src>

<mosaic_0001>
module attributes {stable_mosaic.version = 11 : i64} {
  func.func @kernel(%arg0: i32, %arg1: memref<1x32x256xf32, #tpu.memory_space<vmem>>, %arg2: memref<8x32xf32, #tpu.memory_space<vmem>>, %arg3: memref<8x1xf32, #tpu.memory_space<vmem>>, %arg4: memref<8x1xf32, #tpu.memory_space<vmem>>, %arg5: memref<4x8x32xf32, #tpu.memory_space<vmem>>, %arg6: memref<8x1xf32, #tpu.memory_space<vmem>>, %arg7: memref<8x1xf32, #tpu.memory_space<vmem>>, %arg8: memref<16x8xf32, #tpu.memory_space<vmem>>, %arg9: memref<16x1xf32, #tpu.memory_space<vmem>>, %arg10: memref<16x1xf32, #tpu.memory_space<vmem>>, %arg11: memref<8x1x256xf32, #tpu.memory_space<vmem>>, %arg12: memref<1x4x16x256xf32, #tpu.memory_space<vmem>>) attributes {dimension_semantics = [#tpu.dimension_semantics<parallel>], iteration_bounds = array<i64: 2>, scalar_prefetch = 0 : i64, scratch_operands = 0 : i64, tpu.core_type = #tpu.core_type<tc>, window_params = [{transform_indices = @transform_0, window_bounds = array<i64: 1, 32, 256>}, {pipeline_mode = #tpu.pipeline_mode<synchronous>, transform_indices = @transform_1, window_bounds = array<i64: 8, 32>}, {pipeline_mode = #tpu.pipeline_mode<synchronous>, transform_indices = @transform_2, window_bounds = array<i64: 8, 1>}, {pipeline_mode = #tpu.pipeline_mode<synchronous>, transform_indices = @transform_3, window_bounds = array<i64: 8, 1>}, {pipeline_mode = #tpu.pipeline_mode<synchronous>, transform_indices = @transform_4, window_bounds = array<i64: 4, 8, 32>}, {pipeline_mode = #tpu.pipeline_mode<synchronous>, transform_indices = @transform_5, window_bounds = array<i64: 8, 1>}, {pipeline_mode = #tpu.pipeline_mode<synchronous>, transform_indices = @transform_6, window_bounds = array<i64: 8, 1>}, {pipeline_mode = #tpu.pipeline_mode<synchronous>, transform_indices = @transform_7, window_bounds = array<i64: 16, 8>}, {pipeline_mode = #tpu.pipeline_mode<synchronous>, transform_indices = @transform_8, window_bounds = array<i64: 16, 1>}, {pipeline_mode = #tpu.pipeline_mode<synchronous>, transform_indices = @transform_9, window_bounds = array<i64: 16, 1>}, {pipeline_mode = #tpu.pipeline_mode<synchronous>, transform_indices = @transform_10, window_bounds = array<i64: 8, 1, 256>}, {transform_indices = @transform_11, window_bounds = array<i64: 1, 4, 16, 256>}]} {
    %c0 = arith.constant 0 : index
    %c0_0 = arith.constant 0 : index
    %c0_1 = arith.constant 0 : index
    %0 = vector.load %arg1[%c0, %c0_0, %c0_1] : memref<1x32x256xf32, #tpu.memory_space<vmem>>, vector<1x32x256xf32>
    %1 = vector.shape_cast %0 : vector<1x32x256xf32> to vector<32x256xf32>
    %c0_2 = arith.constant 0 : index
    %c0_3 = arith.constant 0 : index
    %2 = vector.load %arg2[%c0_2, %c0_3] : memref<8x32xf32, #tpu.memory_space<vmem>>, vector<8x32xf32>
    %cst = arith.constant dense<0.000000e+00> : vector<8x256xf32>
    %3 = tpu.matmul %2, %1, %cst {dimension_numbers = #tpu.dot_dimension_numbers<[1], [0], [0], [1], [0, 0, 1, 1], [], []>} : vector<8x32xf32>, vector<32x256xf32>, vector<8x256xf32> -> vector<8x256xf32>
    %c0_4 = arith.constant 0 : index
    %c0_5 = arith.constant 0 : index
    %4 = vector.load %arg3[%c0_4, %c0_5] : memref<8x1xf32, #tpu.memory_space<vmem>>, vector<8x1xf32>
    %5 = vector.broadcast %4 : vector<8x1xf32> to vector<8x256xf32>
    %6 = arith.mulf %3, %5 : vector<8x256xf32>
    %c0_6 = arith.constant 0 : index
    %c0_7 = arith.constant 0 : index
    %7 = vector.load %arg4[%c0_6, %c0_7] : memref<8x1xf32, #tpu.memory_space<vmem>>, vector<8x1xf32>
    %8 = vector.broadcast %7 : vector<8x1xf32> to vector<8x256xf32>
    %9 = arith.addf %6, %8 : vector<8x256xf32>
    %cst_8 = arith.constant 0.000000e+00 : f32
    %10 = vector.broadcast %cst_8 : f32 to vector<8x256xf32>
    %11 = arith.maximumf %9, %10 : vector<8x256xf32>
    %12 = vector.extract_strided_slice %11 {offsets = [0, 239], sizes = [8, 17], strides = [1, 1]} : vector<8x256xf32> to vector<8x17xf32>
    %13 = vector.extract_strided_slice %11 {offsets = [0, 0], sizes = [8, 239], strides = [1, 1]} : vector<8x256xf32> to vector<8x239xf32>
    %14 = tpu.concatenate %12, %13 in 1 : vector<8x17xf32>, vector<8x239xf32> -> vector<8x256xf32>
    %c0_9 = arith.constant 0 : index
    %c0_10 = arith.constant 0 : index
    %c0_11 = arith.constant 0 : index
    %15 = vector.load %arg11[%c0_9, %c0_10, %c0_11] : memref<8x1x256xf32, #tpu.memory_space<vmem>>, vector<1x1x256xf32>
    %16 = vector.shape_cast %15 : vector<1x1x256xf32> to vector<1x256xf32>
    %17 = vector.broadcast %16 : vector<1x256xf32> to vector<8x256xf32>
    %18 = arith.mulf %14, %17 : vector<8x256xf32>
    %19 = vector.extract_strided_slice %11 {offsets = [0, 240], sizes = [8, 16], strides = [1, 1]} : vector<8x256xf32> to vector<8x16xf32>
    %20 = vector.extract_strided_slice %11 {offsets = [0, 0], sizes = [8, 240], strides = [1, 1]} : vector<8x256xf32> to vector<8x240xf32>
    %21 = tpu.concatenate %19, %20 in 1 : vector<8x16xf32>, vector<8x240xf32> -> vector<8x256xf32>
    %c1 = arith.constant 1 : index
    %c0_12 = arith.constant 0 : index
    %c0_13 = arith.constant 0 : index
    %22 = vector.load %arg11[%c1, %c0_12, %c0_13] : memref<8x1x256xf32, #tpu.memory_space<vmem>>, vector<1x1x256xf32>
    %23 = vector.shape_cast %22 : vector<1x1x256xf32> to vector<1x256xf32>
    %24 = vector.broadcast %23 : vector<1x256xf32> to vector<8x256xf32>
    %25 = arith.mulf %21, %24 : vector<8x256xf32>
    %26 = vector.extract_strided_slice %11 {offsets = [0, 241], sizes = [8, 15], strides = [1, 1]} : vector<8x256xf32> to vector<8x15xf32>
    %27 = vector.extract_strided_slice %11 {offsets = [0, 0], sizes = [8, 241], strides = [1, 1]} : vector<8x256xf32> to vector<8x241xf32>
    %28 = tpu.concatenate %26, %27 in 1 : vector<8x15xf32>, vector<8x241xf32> -> vector<8x256xf32>
    %c2 = arith.constant 2 : index
    %c0_14 = arith.constant 0 : index
    %c0_15 = arith.constant 0 : index
    %29 = vector.load %arg11[%c2, %c0_14, %c0_15] : memref<8x1x256xf32, #tpu.memory_space<vmem>>, vector<1x1x256xf32>
    %30 = vector.shape_cast %29 : vector<1x1x256xf32> to vector<1x256xf32>
    %31 = vector.broadcast %30 : vector<1x256xf32> to vector<8x256xf32>
    %32 = arith.mulf %28, %31 : vector<8x256xf32>
    %33 = vector.extract_strided_slice %11 {offsets = [0, 255], sizes = [8, 1], strides = [1, 1]} : vector<8x256xf32> to vector<8x1xf32>
    %34 = vector.extract_strided_slice %11 {offsets = [0, 0], sizes = [8, 255], strides = [1, 1]} : vector<8x256xf32> to vector<8x255xf32>
    %35 = tpu.concatenate %33, %34 in 1 : vector<8x1xf32>, vector<8x255xf32> -> vector<8x256xf32>
    %c3 = arith.constant 3 : index
    %c0_16 = arith.constant 0 : index
    %c0_17 = arith.constant 0 : index
    %36 = vector.load %arg11[%c3, %c0_16, %c0_17] : memref<8x1x256xf32, #tpu.memory_space<vmem>>, vector<1x1x256xf32>
    %37 = vector.shape_cast %36 : vector<1x1x256xf32> to vector<1x256xf32>
    %38 = vector.broadcast %37 : vector<1x256xf32> to vector<8x256xf32>
    %39 = arith.mulf %35, %38 : vector<8x256xf32>
    %40 = vector.extract_strided_slice %11 {offsets = [0, 1], sizes = [8, 255], strides = [1, 1]} : vector<8x256xf32> to vector<8x255xf32>
    %41 = vector.extract_strided_slice %11 {offsets = [0, 0], sizes = [8, 1], strides = [1, 1]} : vector<8x256xf32> to vector<8x1xf32>
    %42 = tpu.concatenate %40, %41 in 1 : vector<8x255xf32>, vector<8x1xf32> -> vector<8x256xf32>
    %c4 = arith.constant 4 : index
    %c0_18 = arith.constant 0 : index
    %c0_19 = arith.constant 0 : index
    %43 = vector.load %arg11[%c4, %c0_18, %c0_19] : memref<8x1x256xf32, #tpu.memory_space<vmem>>, vector<1x1x256xf32>
    %44 = vector.shape_cast %43 : vector<1x1x256xf32> to vector<1x256xf32>
    %45 = vector.broadcast %44 : vector<1x256xf32> to vector<8x256xf32>
    %46 = arith.mulf %42, %45 : vector<8x256xf32>
    %47 = vector.extract_strided_slice %11 {offsets = [0, 15], sizes = [8, 241], strides = [1, 1]} : vector<8x256xf32> to vector<8x241xf32>
    %48 = vector.extract_strided_slice %11 {offsets = [0, 0], sizes = [8, 15], strides = [1, 1]} : vector<8x256xf32> to vector<8x15xf32>
    %49 = tpu.concatenate %47, %48 in 1 : vector<8x241xf32>, vector<8x15xf32> -> vector<8x256xf32>
    %c5 = arith.constant 5 : index
    %c0_20 = arith.constant 0 : index
    %c0_21 = arith.constant 0 : index
    %50 = vector.load %arg11[%c5, %c0_20, %c0_21] : memref<8x1x256xf32, #tpu.memory_space<vmem>>, vector<1x1x256xf32>
    %51 = vector.shape_cast %50 : vector<1x1x256xf32> to vector<1x256xf32>
    %52 = vector.broadcast %51 : vector<1x256xf32> to vector<8x256xf32>
    %53 = arith.mulf %49, %52 : vector<8x256xf32>
    %54 = vector.extract_strided_slice %11 {offsets = [0, 16], sizes = [8, 240], strides = [1, 1]} : vector<8x256xf32> to vector<8x240xf32>
    %55 = vector.extract_strided_slice %11 {offsets = [0, 0], sizes = [8, 16], strides = [1, 1]} : vector<8x256xf32> to vector<8x16xf32>
    %56 = tpu.concatenate %54, %55 in 1 : vector<8x240xf32>, vector<8x16xf32> -> vector<8x256xf32>
    %c6 = arith.constant 6 : index
    %c0_22 = arith.constant 0 : index
    %c0_23 = arith.constant 0 : index
    %57 = vector.load %arg11[%c6, %c0_22, %c0_23] : memref<8x1x256xf32, #tpu.memory_space<vmem>>, vector<1x1x256xf32>
    %58 = vector.shape_cast %57 : vector<1x1x256xf32> to vector<1x256xf32>
    %59 = vector.broadcast %58 : vector<1x256xf32> to vector<8x256xf32>
    %60 = arith.mulf %56, %59 : vector<8x256xf32>
    %61 = vector.extract_strided_slice %11 {offsets = [0, 17], sizes = [8, 239], strides = [1, 1]} : vector<8x256xf32> to vector<8x239xf32>
    %62 = vector.extract_strided_slice %11 {offsets = [0, 0], sizes = [8, 17], strides = [1, 1]} : vector<8x256xf32> to vector<8x17xf32>
    %63 = tpu.concatenate %61, %62 in 1 : vector<8x239xf32>, vector<8x17xf32> -> vector<8x256xf32>
    %c7 = arith.constant 7 : index
    %c0_24 = arith.constant 0 : index
    %c0_25 = arith.constant 0 : index
    %64 = vector.load %arg11[%c7, %c0_24, %c0_25] : memref<8x1x256xf32, #tpu.memory_space<vmem>>, vector<1x1x256xf32>
    %65 = vector.shape_cast %64 : vector<1x1x256xf32> to vector<1x256xf32>
    %66 = vector.broadcast %65 : vector<1x256xf32> to vector<8x256xf32>
    %67 = arith.mulf %63, %66 : vector<8x256xf32>
    %68 = tpu.concatenate %11, %39, %25, %18 in 0 : vector<8x256xf32>, vector<8x256xf32>, vector<8x256xf32>, vector<8x256xf32> -> vector<32x256xf32>
    %c0_26 = arith.constant 0 : index
    %c0_27 = arith.constant 0 : index
    %c0_28 = arith.constant 0 : index
    %69 = vector.load %arg5[%c0_26, %c0_27, %c0_28] : memref<4x8x32xf32, #tpu.memory_space<vmem>>, vector<1x8x32xf32>
    %70 = vector.shape_cast %69 : vector<1x8x32xf32> to vector<8x32xf32>
    %cst_29 = arith.constant dense<0.000000e+00> : vector<8x256xf32>
    %71 = tpu.matmul %70, %68, %cst_29 {dimension_numbers = #tpu.dot_dimension_numbers<[1], [0], [0], [1], [0, 0, 1, 1], [], []>} : vector<8x32xf32>, vector<32x256xf32>, vector<8x256xf32> -> vector<8x256xf32>
    %72 = tpu.concatenate %11, %46, %25, %32 in 0 : vector<8x256xf32>, vector<8x256xf32>, vector<8x256xf32>, vector<8x256xf32> -> vector<32x256xf32>
    %c1_30 = arith.constant 1 : index
    %c0_31 = arith.constant 0 : index
    %c0_32 = arith.constant 0 : index
    %73 = vector.load %arg5[%c1_30, %c0_31, %c0_32] : memref<4x8x32xf32, #tpu.memory_space<vmem>>, vector<1x8x32xf32>
    %74 = vector.shape_cast %73 : vector<1x8x32xf32> to vector<8x32xf32>
    %cst_33 = arith.constant dense<0.000000e+00> : vector<8x256xf32>
    %75 = tpu.matmul %74, %72, %cst_33 {dimension_numbers = #tpu.dot_dimension_numbers<[1], [0], [0], [1], [0, 0, 1, 1], [], []>} : vector<8x32xf32>, vector<32x256xf32>, vector<8x256xf32> -> vector<8x256xf32>
    %76 = tpu.concatenate %11, %39, %60, %53 in 0 : vector<8x256xf32>, vector<8x256xf32>, vector<8x256xf32>, vector<8x256xf32> -> vector<32x256xf32>
    %c2_34 = arith.constant 2 : index
    %c0_35 = arith.constant 0 : index
    %c0_36 = arith.constant 0 : index
    %77 = vector.load %arg5[%c2_34, %c0_35, %c0_36] : memref<4x8x32xf32, #tpu.memory_space<vmem>>, vector<1x8x32xf32>
    %78 = vector.shape_cast %77 : vector<1x8x32xf32> to vector<8x32xf32>
    %cst_37 = arith.constant dense<0.000000e+00> : vector<8x256xf32>
    %79 = tpu.matmul %78, %76, %cst_37 {dimension_numbers = #tpu.dot_dimension_numbers<[1], [0], [0], [1], [0, 0, 1, 1], [], []>} : vector<8x32xf32>, vector<32x256xf32>, vector<8x256xf32> -> vector<8x256xf32>
    %80 = tpu.concatenate %11, %46, %60, %67 in 0 : vector<8x256xf32>, vector<8x256xf32>, vector<8x256xf32>, vector<8x256xf32> -> vector<32x256xf32>
    %c3_38 = arith.constant 3 : index
    %c0_39 = arith.constant 0 : index
    %c0_40 = arith.constant 0 : index
    %81 = vector.load %arg5[%c3_38, %c0_39, %c0_40] : memref<4x8x32xf32, #tpu.memory_space<vmem>>, vector<1x8x32xf32>
    %82 = vector.shape_cast %81 : vector<1x8x32xf32> to vector<8x32xf32>
    %cst_41 = arith.constant dense<0.000000e+00> : vector<8x256xf32>
    %83 = tpu.matmul %82, %80, %cst_41 {dimension_numbers = #tpu.dot_dimension_numbers<[1], [0], [0], [1], [0, 0, 1, 1], [], []>} : vector<8x32xf32>, vector<32x256xf32>, vector<8x256xf32> -> vector<8x256xf32>
    %84 = tpu.concatenate %71, %75, %79, %83 in 1 : vector<8x256xf32>, vector<8x256xf32>, vector<8x256xf32>, vector<8x256xf32> -> vector<8x1024xf32>
    %c0_42 = arith.constant 0 : index
    %c0_43 = arith.constant 0 : index
    %85 = vector.load %arg6[%c0_42, %c0_43] : memref<8x1xf32, #tpu.memory_space<vmem>>, vector<8x1xf32>
    %86 = vector.broadcast %85 : vector<8x1xf32> to vector<8x1024xf32>
    %87 = arith.mulf %84, %86 : vector<8x1024xf32>
    %c0_44 = arith.constant 0 : index
    %c0_45 = arith.constant 0 : index
    %88 = vector.load %arg7[%c0_44, %c0_45] : memref<8x1xf32, #tpu.memory_space<vmem>>, vector<8x1xf32>
    %89 = vector.broadcast %88 : vector<8x1xf32> to vector<8x1024xf32>
    %90 = arith.addf %87, %89 : vector<8x1024xf32>
    %cst_46 = arith.constant 0.000000e+00 : f32
    %91 = vector.broadcast %cst_46 : f32 to vector<8x1024xf32>
    %92 = arith.maximumf %90, %91 : vector<8x1024xf32>
    %c0_47 = arith.constant 0 : index
    %c0_48 = arith.constant 0 : index
    %93 = vector.load %arg8[%c0_47, %c0_48] : memref<16x8xf32, #tpu.memory_space<vmem>>, vector<16x8xf32>
    %cst_49 = arith.constant dense<0.000000e+00> : vector<16x1024xf32>
    %94 = tpu.matmul %93, %92, %cst_49 {dimension_numbers = #tpu.dot_dimension_numbers<[1], [0], [0], [1], [0, 0, 1, 1], [], []>} : vector<16x8xf32>, vector<8x1024xf32>, vector<16x1024xf32> -> vector<16x1024xf32>
    %c0_50 = arith.constant 0 : index
    %c0_51 = arith.constant 0 : index
    %95 = vector.load %arg9[%c0_50, %c0_51] : memref<16x1xf32, #tpu.memory_space<vmem>>, vector<16x1xf32>
    %96 = vector.broadcast %95 : vector<16x1xf32> to vector<16x1024xf32>
    %97 = arith.mulf %94, %96 : vector<16x1024xf32>
    %c0_52 = arith.constant 0 : index
    %c0_53 = arith.constant 0 : index
    %98 = vector.load %arg10[%c0_52, %c0_53] : memref<16x1xf32, #tpu.memory_space<vmem>>, vector<16x1xf32>
    %99 = vector.broadcast %98 : vector<16x1xf32> to vector<16x1024xf32>
    %100 = arith.addf %97, %99 : vector<16x1024xf32>
    %cst_54 = arith.constant 0.000000e+00 : f32
    %101 = vector.broadcast %cst_54 : f32 to vector<16x1024xf32>
    %102 = arith.maximumf %100, %101 : vector<16x1024xf32>
    %103 = vector.extract_strided_slice %102 {offsets = [0, 0], sizes = [16, 256], strides = [1, 1]} : vector<16x1024xf32> to vector<16x256xf32>
    %c0_55 = arith.constant 0 : index
    %c0_56 = arith.constant 0 : index
    %c0_57 = arith.constant 0 : index
    %c0_58 = arith.constant 0 : index
    %104 = vector.load %arg12[%c0_55, %c0_56, %c0_57, %c0_58] : memref<1x4x16x256xf32, #tpu.memory_space<vmem>>, vector<1x1x16x256xf32>
    %105 = vector.shape_cast %104 : vector<1x1x16x256xf32> to vector<16x256xf32>
    %106 = vector.shape_cast %103 : vector<16x256xf32> to vector<1x1x16x256xf32>
    tpu.vector_store %arg12[%c0_55, %c0_56, %c0_57, %c0_58], %106 {strides = array<i32>} : memref<1x4x16x256xf32, #tpu.memory_space<vmem>>, vector<1x1x16x256xf32>,
    %107 = vector.extract_strided_slice %102 {offsets = [0, 256], sizes = [16, 256], strides = [1, 1]} : vector<16x1024xf32> to vector<16x256xf32>
    %c0_59 = arith.constant 0 : index
    %c1_60 = arith.constant 1 : index
    %c0_61 = arith.constant 0 : index
    %c0_62 = arith.constant 0 : index
    %108 = vector.load %arg12[%c0_59, %c1_60, %c0_61, %c0_62] : memref<1x4x16x256xf32, #tpu.memory_space<vmem>>, vector<1x1x16x256xf32>
    %109 = vector.shape_cast %108 : vector<1x1x16x256xf32> to vector<16x256xf32>
    %110 = vector.shape_cast %107 : vector<16x256xf32> to vector<1x1x16x256xf32>
    tpu.vector_store %arg12[%c0_59, %c1_60, %c0_61, %c0_62], %110 {strides = array<i32>} : memref<1x4x16x256xf32, #tpu.memory_space<vmem>>, vector<1x1x16x256xf32>,
    %111 = vector.extract_strided_slice %102 {offsets = [0, 512], sizes = [16, 256], strides = [1, 1]} : vector<16x1024xf32> to vector<16x256xf32>
    %c0_63 = arith.constant 0 : index
    %c2_64 = arith.constant 2 : index
    %c0_65 = arith.constant 0 : index
    %c0_66 = arith.constant 0 : index
    %112 = vector.load %arg12[%c0_63, %c2_64, %c0_65, %c0_66] : memref<1x4x16x256xf32, #tpu.memory_space<vmem>>, vector<1x1x16x256xf32>
    %113 = vector.shape_cast %112 : vector<1x1x16x256xf32> to vector<16x256xf32>
    %114 = vector.shape_cast %111 : vector<16x256xf32> to vector<1x1x16x256xf32>
    tpu.vector_store %arg12[%c0_63, %c2_64, %c0_65, %c0_66], %114 {strides = array<i32>} : memref<1x4x16x256xf32, #tpu.memory_space<vmem>>, vector<1x1x16x256xf32>,
    %115 = vector.extract_strided_slice %102 {offsets = [0, 768], sizes = [16, 256], strides = [1, 1]} : vector<16x1024xf32> to vector<16x256xf32>
    %c0_67 = arith.constant 0 : index
    %c3_68 = arith.constant 3 : index
    %c0_69 = arith.constant 0 : index
    %c0_70 = arith.constant 0 : index
    %116 = vector.load %arg12[%c0_67, %c3_68, %c0_69, %c0_70] : memref<1x4x16x256xf32, #tpu.memory_space<vmem>>, vector<1x1x16x256xf32>
    %117 = vector.shape_cast %116 : vector<1x1x16x256xf32> to vector<16x256xf32>
    %118 = vector.shape_cast %115 : vector<16x256xf32> to vector<1x1x16x256xf32>
    tpu.vector_store %arg12[%c0_67, %c3_68, %c0_69, %c0_70], %118 {strides = array<i32>} : memref<1x4x16x256xf32, #tpu.memory_space<vmem>>, vector<1x1x16x256xf32>,
    return
  }
  func.func @transform_0(%arg0: i32) -> (i32, i32, i32) {
    %c0_i32 = arith.constant 0 : i32
    %c0_i32_0 = arith.constant 0 : i32
    %c0_i32_1 = arith.constant 0 : i32
    return %arg0, %c0_i32, %c0_i32_0 : i32, i32, i32
  }
  func.func @transform_1(%arg0: i32) -> (i32, i32) {
    %c0_i32 = arith.constant 0 : i32
    %c0_i32_0 = arith.constant 0 : i32
    %c0_i32_1 = arith.constant 0 : i32
    return %c0_i32, %c0_i32_0 : i32, i32
  }
  func.func @transform_2(%arg0: i32) -> (i32, i32) {
    %c0_i32 = arith.constant 0 : i32
    %c0_i32_0 = arith.constant 0 : i32
    %c0_i32_1 = arith.constant 0 : i32
    return %c0_i32, %c0_i32_0 : i32, i32
  }
  func.func @transform_3(%arg0: i32) -> (i32, i32) {
    %c0_i32 = arith.constant 0 : i32
    %c0_i32_0 = arith.constant 0 : i32
    %c0_i32_1 = arith.constant 0 : i32
    return %c0_i32, %c0_i32_0 : i32, i32
  }
  func.func @transform_4(%arg0: i32) -> (i32, i32, i32) {
    %c0_i32 = arith.constant 0 : i32
    %c0_i32_0 = arith.constant 0 : i32
    %c0_i32_1 = arith.constant 0 : i32
    %c0_i32_2 = arith.constant 0 : i32
    return %c0_i32, %c0_i32_0, %c0_i32_1 : i32, i32, i32
  }
  func.func @transform_5(%arg0: i32) -> (i32, i32) {
    %c0_i32 = arith.constant 0 : i32
    %c0_i32_0 = arith.constant 0 : i32
    %c0_i32_1 = arith.constant 0 : i32
    return %c0_i32, %c0_i32_0 : i32, i32
  }
  func.func @transform_6(%arg0: i32) -> (i32, i32) {
    %c0_i32 = arith.constant 0 : i32
    %c0_i32_0 = arith.constant 0 : i32
    %c0_i32_1 = arith.constant 0 : i32
    return %c0_i32, %c0_i32_0 : i32, i32
  }
  func.func @transform_7(%arg0: i32) -> (i32, i32) {
    %c0_i32 = arith.constant 0 : i32
    %c0_i32_0 = arith.constant 0 : i32
    %c0_i32_1 = arith.constant 0 : i32
    return %c0_i32, %c0_i32_0 : i32, i32
  }
  func.func @transform_8(%arg0: i32) -> (i32, i32) {
    %c0_i32 = arith.constant 0 : i32
    %c0_i32_0 = arith.constant 0 : i32
    %c0_i32_1 = arith.constant 0 : i32
    return %c0_i32, %c0_i32_0 : i32, i32
  }
  func.func @transform_9(%arg0: i32) -> (i32, i32) {
    %c0_i32 = arith.constant 0 : i32
    %c0_i32_0 = arith.constant 0 : i32
    %c0_i32_1 = arith.constant 0 : i32
    return %c0_i32, %c0_i32_0 : i32, i32
  }
  func.func @transform_10(%arg0: i32) -> (i32, i32, i32) {
    %c0_i32 = arith.constant 0 : i32
    %c0_i32_0 = arith.constant 0 : i32
    %c0_i32_1 = arith.constant 0 : i32
    %c0_i32_2 = arith.constant 0 : i32
    return %c0_i32, %c0_i32_0, %c0_i32_1 : i32, i32, i32
  }
  func.func @transform_11(%arg0: i32) -> (i32, i32, i32, i32) {
    %c0_i32 = arith.constant 0 : i32
    %c0_i32_0 = arith.constant 0 : i32
    %c0_i32_1 = arith.constant 0 : i32
    %c0_i32_2 = arith.constant 0 : i32
    return %arg0, %c0_i32, %c0_i32_0, %c0_i32_1 : i32, i32, i32, i32
  }
}

</mosaic_0001>

<llo_original>
// kernel: tpu_custom_call.1
$region0: #{tpu_custom_call.1}
  #allocation0 [shape = 'u32[]', space=smem, size = 0x4, offset = 0x4, fixed_abs, tag = 'smem constant byte address 0x4 - core index']
  #allocation1 [shape = 'u32[72,128]{1,0:T(1,128)}', space=vmem, size = 0x9000, scoped, tag = 'internal scratch']
  %s0 = inlined_call_operand.hbm [shape: f32[2,32,256], index: 0, kind: input, shape index: {}]
  %s1 = inlined_call_operand.vmem [shape: f32[8,32], index: 1, kind: input, shape index: {}]
  %s2 = inlined_call_operand.vmem [shape: f32[8,1], index: 2, kind: input, shape index: {}]
  %s3 = inlined_call_operand.vmem [shape: f32[8,1], index: 3, kind: input, shape index: {}]
  %s4 = inlined_call_operand.vmem [shape: f32[4,8,32], index: 4, kind: input, shape index: {}]
  %s5 = inlined_call_operand.vmem [shape: f32[8,1], index: 5, kind: input, shape index: {}]
  %s6 = inlined_call_operand.vmem [shape: f32[8,1], index: 6, kind: input, shape index: {}]
  %s7 = inlined_call_operand.vmem [shape: f32[16,8], index: 7, kind: input, shape index: {}]
  %s8 = inlined_call_operand.vmem [shape: f32[16,1], index: 8, kind: input, shape index: {}]
  %s9 = inlined_call_operand.vmem [shape: f32[16,1], index: 9, kind: input, shape index: {}]
  %s10 = inlined_call_operand.vmem [shape: f32[8,1,256], index: 10, kind: input, shape index: {}]
  %s11 = inlined_call_operand.hbm [shape: f32[2,4,16,256], index: 11, kind: output, shape index: {}]
  %s12 = sld [smem:[#allocation0]]
  $region81: #{tpu_custom_call.1} parent=0
    _
  %s14 = ssub.s32 1, %s12
  %s15 = scalar_select 0, %s14, %s12
  $region1: #{tpu_custom_call.1} parent=0
    #allocation2 [shape = 'u8[65536]{0}', space=vmem, size = 0x10000, scoped, tag = 'input window, operand 0']
    #allocation3 [shape = 's32[2]{0}', space=sflag, size = 0x8, scoped, tag = 'scoped memory for tpu_custom_call.1']
    #allocation4 [shape = 's32[2]{0}', space=sflag, size = 0x8, scoped, tag = 'scoped memory for tpu_custom_call.1']
    #allocation5 [shape = 'u8[131072]{0}', space=vmem, size = 0x20000, scoped, tag = 'output window, operand 0']
    %16 = vsyncpa [#allocation3], 0
    %s17 = scalar_lea.sflag [#allocation3], 1
    %18 = vsyncpa %s17, 0
    %19 = vsyncpa [#allocation4], 0
    %s20 = scalar_lea.sflag [#allocation4], 1
    %21 = vsyncpa %s20, 0
    loop: start=0, step=1, limit=4
    $region2: #{tpu_custom_call.1} parent=1 // loop_pre_header
      _
    $region3: #{tpu_custom_call.1} parent=1 // loop_header
      %s23 = sphi 0, %s27
      %p24 = scmp.ge.s32.totalorder %s23, 4
      %s33 = sphi 0, %s35
      %s36 = sphi 0, %s33
      %s37 = sphi 0, %s36
      %s53 = sphi 0, %s37
      %s57 = sphi 0, %s57
      %s59 = sphi 0, %s57
      %s60 = sphi 0, %s59
      %s74 = sphi 0, %s60
      %s78 = sphi 0, %s78
      %s80 = sphi 0, %s78
      %s81 = sphi 0, %s80
      %s95 = sphi 0, %s81
      %s99 = sphi 0, %s99
      %s101 = sphi 0, %s99
      %s102 = sphi 0, %s101
      %s116 = sphi 0, %s102
      %s120 = sphi 0, %s120
      %s122 = sphi 0, %s120
      %s123 = sphi 0, %s122
      %s137 = sphi 0, %s123
      %s141 = sphi 0, %s141
      %s143 = sphi 0, %s141
      %s144 = sphi 0, %s143
      %s158 = sphi 0, %s144
      %s162 = sphi 0, %s162
      %s164 = sphi 0, %s162
      %s165 = sphi 0, %s164
      %s179 = sphi 0, %s165
      %s183 = sphi 0, %s183
      %s185 = sphi 0, %s183
      %s186 = sphi 0, %s185
      %s200 = sphi 0, %s186
      %s204 = sphi 0, %s204
      %s206 = sphi 0, %s204
      %s207 = sphi 0, %s206
      %s221 = sphi 0, %s207
      %s225 = sphi 0, %s225
      %s227 = sphi 0, %s225
      %s228 = sphi 0, %s227
      %s242 = sphi 0, %s228
      %s246 = sphi 0, %s246
      %s248 = sphi 0, %s246
      %s249 = sphi 0, %s248
      %s263 = sphi 0, %s249
      %s269 = sphi 0, %s271
      %s272 = sphi 0, %s269
      %s273 = sphi 0, %s272
      %s289 = sphi 0, %s273
    $region4: #{tpu_custom_call.1} parent=1 // loop_header_branch
      %26 = sbr.rel (%p24) target = $region8
    $region5: #{tpu_custom_call.1} parent=1 // loop_body
      %s28 = ssub.s32 %s23, 1
      %s29 = ssub.s32 %s23, 2
      %s30 = sadd.s32 %s23, 1
      %s31 = ssub.s32 %s23, %s30
      %p32 = scmp.eq.s32.totalorder %s31, 0
      %s34 = sadd.s32 %s33, 1
      %s35 = scalar_select %p32, %s33, %s34
      %p38 = pneg %p32
      %p39 = scmp.eq.s32.totalorder %s23, 1
      %p40 = por %p38, %p39
      %p41 = scmp.ne.s32.totalorder %s33, %s36
      %p42 = scmp.eq.s32.totalorder %s23, 0
      %p43 = por %p41, %p42
      %p44 = scmp.ne.s32.totalorder %s33, %s36
      %p45 = scmp.eq.s32.totalorder %s28, 1
      %p46 = por %p44, %p45
      %p47 = scmp.ne.s32.totalorder %s36, %s37
      %p48 = scmp.eq.s32.totalorder %s28, 0
      %p49 = por %p47, %p48
      %p50 = scmp.ne.s32.totalorder %s36, %s37
      %p51 = scmp.eq.s32.totalorder %s29, 1
      %p52 = por %p50, %p51
      %p54 = scmp.ne.s32.totalorder %s37, %s53
      %p55 = scmp.eq.s32.totalorder %s29, 0
      %p56 = por %p54, %p55
      %s58 = sadd.s32 %s57, 1
      %p61 = scmp.eq.s32.totalorder %s23, 1
      %p62 = scmp.ne.s32.totalorder %s57, %s59
      %p63 = scmp.eq.s32.totalorder %s23, 0
      %p64 = por %p62, %p63
      %p65 = scmp.ne.s32.totalorder %s57, %s59
      %p66 = scmp.eq.s32.totalorder %s28, 1
      %p67 = por %p65, %p66
      %p68 = scmp.ne.s32.totalorder %s59, %s60
      %p69 = scmp.eq.s32.totalorder %s28, 0
      %p70 = por %p68, %p69
      %p71 = scmp.ne.s32.totalorder %s59, %s60
      %p72 = scmp.eq.s32.totalorder %s29, 1
      %p73 = por %p71, %p72
      %p75 = scmp.ne.s32.totalorder %s60, %s74
      %p76 = scmp.eq.s32.totalorder %s29, 0
      %p77 = por %p75, %p76
      %s79 = sadd.s32 %s78, 1
      %p82 = scmp.eq.s32.totalorder %s23, 1
      %p83 = scmp.ne.s32.totalorder %s78, %s80
      %p84 = scmp.eq.s32.totalorder %s23, 0
      %p85 = por %p83, %p84
      %p86 = scmp.ne.s32.totalorder %s78, %s80
      %p87 = scmp.eq.s32.totalorder %s28, 1
      %p88 = por %p86, %p87
      %p89 = scmp.ne.s32.totalorder %s80, %s81
      %p90 = scmp.eq.s32.totalorder %s28, 0
      %p91 = por %p89, %p90
      %p92 = scmp.ne.s32.totalorder %s80, %s81
      %p93 = scmp.eq.s32.totalorder %s29, 1
      %p94 = por %p92, %p93
      %p96 = scmp.ne.s32.totalorder %s81, %s95
      %p97 = scmp.eq.s32.totalorder %s29, 0
      %p98 = por %p96, %p97
      %s100 = sadd.s32 %s99, 1
      %p103 = scmp.eq.s32.totalorder %s23, 1
      %p104 = scmp.ne.s32.totalorder %s99, %s101
      %p105 = scmp.eq.s32.totalorder %s23, 0
      %p106 = por %p104, %p105
      %p107 = scmp.ne.s32.totalorder %s99, %s101
      %p108 = scmp.eq.s32.totalorder %s28, 1
      %p109 = por %p107, %p108
      %p110 = scmp.ne.s32.totalorder %s101, %s102
      %p111 = scmp.eq.s32.totalorder %s28, 0
      %p112 = por %p110, %p111
      %p113 = scmp.ne.s32.totalorder %s101, %s102
      %p114 = scmp.eq.s32.totalorder %s29, 1
      %p115 = por %p113, %p114
      %p117 = scmp.ne.s32.totalorder %s102, %s116
      %p118 = scmp.eq.s32.totalorder %s29, 0
      %p119 = por %p117, %p118
      %s121 = sadd.s32 %s120, 1
      %p124 = scmp.eq.s32.totalorder %s23, 1
      %p125 = scmp.ne.s32.totalorder %s120, %s122
      %p126 = scmp.eq.s32.totalorder %s23, 0
      %p127 = por %p125, %p126
      %p128 = scmp.ne.s32.totalorder %s120, %s122
      %p129 = scmp.eq.s32.totalorder %s28, 1
      %p130 = por %p128, %p129
      %p131 = scmp.ne.s32.totalorder %s122, %s123
      %p132 = scmp.eq.s32.totalorder %s28, 0
      %p133 = por %p131, %p132
      %p134 = scmp.ne.s32.totalorder %s122, %s123
      %p135 = scmp.eq.s32.totalorder %s29, 1
      %p136 = por %p134, %p135
      %p138 = scmp.ne.s32.totalorder %s123, %s137
      %p139 = scmp.eq.s32.totalorder %s29, 0
      %p140 = por %p138, %p139
      %s142 = sadd.s32 %s141, 1
      %p145 = scmp.eq.s32.totalorder %s23, 1
      %p146 = scmp.ne.s32.totalorder %s141, %s143
      %p147 = scmp.eq.s32.totalorder %s23, 0
      %p148 = por %p146, %p147
      %p149 = scmp.ne.s32.totalorder %s141, %s143
      %p150 = scmp.eq.s32.totalorder %s28, 1
      %p151 = por %p149, %p150
      %p152 = scmp.ne.s32.totalorder %s143, %s144
      %p153 = scmp.eq.s32.totalorder %s28, 0
      %p154 = por %p152, %p153
      %p155 = scmp.ne.s32.totalorder %s143, %s144
      %p156 = scmp.eq.s32.totalorder %s29, 1
      %p157 = por %p155, %p156
      %p159 = scmp.ne.s32.totalorder %s144, %s158
      %p160 = scmp.eq.s32.totalorder %s29, 0
      %p161 = por %p159, %p160
      %s163 = sadd.s32 %s162, 1
      %p166 = scmp.eq.s32.totalorder %s23, 1
      %p167 = scmp.ne.s32.totalorder %s162, %s164
      %p168 = scmp.eq.s32.totalorder %s23, 0
      %p169 = por %p167, %p168
      %p170 = scmp.ne.s32.totalorder %s162, %s164
      %p171 = scmp.eq.s32.totalorder %s28, 1
      %p172 = por %p170, %p171
      %p173 = scmp.ne.s32.totalorder %s164, %s165
      %p174 = scmp.eq.s32.totalorder %s28, 0
      %p175 = por %p173, %p174
      %p176 = scmp.ne.s32.totalorder %s164, %s165
      %p177 = scmp.eq.s32.totalorder %s29, 1
      %p178 = por %p176, %p177
      %p180 = scmp.ne.s32.totalorder %s165, %s179
      %p181 = scmp.eq.s32.totalorder %s29, 0
      %p182 = por %p180, %p181
      %s184 = sadd.s32 %s183, 1
      %p187 = scmp.eq.s32.totalorder %s23, 1
      %p188 = scmp.ne.s32.totalorder %s183, %s185
      %p189 = scmp.eq.s32.totalorder %s23, 0
      %p190 = por %p188, %p189
      %p191 = scmp.ne.s32.totalorder %s183, %s185
      %p192 = scmp.eq.s32.totalorder %s28, 1
      %p193 = por %p191, %p192
      %p194 = scmp.ne.s32.totalorder %s185, %s186
      %p195 = scmp.eq.s32.totalorder %s28, 0
      %p196 = por %p194, %p195
      %p197 = scmp.ne.s32.totalorder %s185, %s186
      %p198 = scmp.eq.s32.totalorder %s29, 1
      %p199 = por %p197, %p198
      %p201 = scmp.ne.s32.totalorder %s186, %s200
      %p202 = scmp.eq.s32.totalorder %s29, 0
      %p203 = por %p201, %p202
      %s205 = sadd.s32 %s204, 1
      %p208 = scmp.eq.s32.totalorder %s23, 1
      %p209 = scmp.ne.s32.totalorder %s204, %s206
      %p210 = scmp.eq.s32.totalorder %s23, 0
      %p211 = por %p209, %p210
      %p212 = scmp.ne.s32.totalorder %s204, %s206
      %p213 = scmp.eq.s32.totalorder %s28, 1
      %p214 = por %p212, %p213
      %p215 = scmp.ne.s32.totalorder %s206, %s207
      %p216 = scmp.eq.s32.totalorder %s28, 0
      %p217 = por %p215, %p216
      %p218 = scmp.ne.s32.totalorder %s206, %s207
      %p219 = scmp.eq.s32.totalorder %s29, 1
      %p220 = por %p218, %p219
      %p222 = scmp.ne.s32.totalorder %s207, %s221
      %p223 = scmp.eq.s32.totalorder %s29, 0
      %p224 = por %p222, %p223
      %s226 = sadd.s32 %s225, 1
      %p229 = scmp.eq.s32.totalorder %s23, 1
      %p230 = scmp.ne.s32.totalorder %s225, %s227
      %p231 = scmp.eq.s32.totalorder %s23, 0
      %p232 = por %p230, %p231
      %p233 = scmp.ne.s32.totalorder %s225, %s227
      %p234 = scmp.eq.s32.totalorder %s28, 1
      %p235 = por %p233, %p234
      %p236 = scmp.ne.s32.totalorder %s227, %s228
      %p237 = scmp.eq.s32.totalorder %s28, 0
      %p238 = por %p236, %p237
      %p239 = scmp.ne.s32.totalorder %s227, %s228
      %p240 = scmp.eq.s32.totalorder %s29, 1
      %p241 = por %p239, %p240
      %p243 = scmp.ne.s32.totalorder %s228, %s242
      %p244 = scmp.eq.s32.totalorder %s29, 0
      %p245 = por %p243, %p244
      %s247 = sadd.s32 %s246, 1
      %p250 = scmp.eq.s32.totalorder %s23, 1
      %p251 = scmp.ne.s32.totalorder %s246, %s248
      %p252 = scmp.eq.s32.totalorder %s23, 0
      %p253 = por %p251, %p252
      %p254 = scmp.ne.s32.totalorder %s246, %s248
      %p255 = scmp.eq.s32.totalorder %s28, 1
      %p256 = por %p254, %p255
      %p257 = scmp.ne.s32.totalorder %s248, %s249
      %p258 = scmp.eq.s32.totalorder %s28, 0
      %p259 = por %p257, %p258
      %p260 = scmp.ne.s32.totalorder %s248, %s249
      %p261 = scmp.eq.s32.totalorder %s29, 1
      %p262 = por %p260, %p261
      %p264 = scmp.ne.s32.totalorder %s249, %s263
      %p265 = scmp.eq.s32.totalorder %s29, 0
      %p266 = por %p264, %p265
      %s267 = ssub.s32 %s23, %s30
      %p268 = scmp.eq.s32.totalorder %s267, 0
      %s270 = sadd.s32 %s269, 1
      %s271 = scalar_select %p268, %s269, %s270
      %p274 = pneg %p268
      %p275 = scmp.eq.s32.totalorder %s23, 1
      %p276 = por %p274, %p275
      %p277 = scmp.ne.s32.totalorder %s269, %s272
      %p278 = scmp.eq.s32.totalorder %s23, 0
      %p279 = por %p277, %p278
      %p280 = scmp.ne.s32.totalorder %s269, %s272
      %p281 = scmp.eq.s32.totalorder %s28, 1
      %p282 = por %p280, %p281
      %p283 = scmp.ne.s32.totalorder %s272, %s273
      %p284 = scmp.eq.s32.totalorder %s28, 0
      %p285 = por %p283, %p284
      %p286 = scmp.ne.s32.totalorder %s272, %s273
      %p287 = scmp.eq.s32.totalorder %s29, 1
      %p288 = por %p286, %p287
      %p290 = scmp.ne.s32.totalorder %s273, %s289
      %p291 = scmp.eq.s32.totalorder %s29, 0
      %p292 = por %p290, %p291
      %p293 = scmp.le.s32.totalorder 1, %s23
      %p294 = scmp.lt.s32.totalorder %s23, 3
      %p295 = pnand %p293, %p294
      %p296 = pneg %p295
      // Predicated region
      $region9: #{tpu_custom_call.1} parent=5 // pred_check
        _
      $region10: #{tpu_custom_call.1} parent=5 // pred_check_branch
        %298 = sbr.rel (%p295) target = $region12
      $region11: #{tpu_custom_call.1} parent=5 // pred_region
        %s299 = ssub.s32 %s23, 1
        // Predicated region
        $region13: #{tpu_custom_call.1} parent=11 // pred_check
          %p300 = pneg %p70
        $region14: #{tpu_custom_call.1} parent=11 // pred_check_branch
          %302 = sbr.rel (%p300) target = $region16
        $region15: #{tpu_custom_call.1} parent=11 // pred_region
          _
        $region16: #{tpu_custom_call.1} parent=11 // pred_fallthru
          _
        // Predicated region
        $region17: #{tpu_custom_call.1} parent=11 // pred_check
          %p303 = pneg %p91
        $region18: #{tpu_custom_call.1} parent=11 // pred_check_branch
          %305 = sbr.rel (%p303) target = $region20
        $region19: #{tpu_custom_call.1} parent=11 // pred_region
          _
        $region20: #{tpu_custom_call.1} parent=11 // pred_fallthru
          _
        // Predicated region
        $region21: #{tpu_custom_call.1} parent=11 // pred_check
          %p306 = pneg %p112
        $region22: #{tpu_custom_call.1} parent=11 // pred_check_branch
          %308 = sbr.rel (%p306) target = $region24
        $region23: #{tpu_custom_call.1} parent=11 // pred_region
          _
        $region24: #{tpu_custom_call.1} parent=11 // pred_fallthru
          _
        // Predicated region
        $region25: #{tpu_custom_call.1} parent=11 // pred_check
          %p309 = pneg %p133
        $region26: #{tpu_custom_call.1} parent=11 // pred_check_branch
          %311 = sbr.rel (%p309) target = $region28
        $region27: #{tpu_custom_call.1} parent=11 // pred_region
          _
        $region28: #{tpu_custom_call.1} parent=11 // pred_fallthru
          _
        // Predicated region
        $region29: #{tpu_custom_call.1} parent=11 // pred_check
          %p312 = pneg %p154
        $region30: #{tpu_custom_call.1} parent=11 // pred_check_branch
          %314 = sbr.rel (%p312) target = $region32
        $region31: #{tpu_custom_call.1} parent=11 // pred_region
          _
        $region32: #{tpu_custom_call.1} parent=11 // pred_fallthru
          _
        // Predicated region
        $region33: #{tpu_custom_call.1} parent=11 // pred_check
          %p315 = pneg %p175
        $region34: #{tpu_custom_call.1} parent=11 // pred_check_branch
          %317 = sbr.rel (%p315) target = $region36
        $region35: #{tpu_custom_call.1} parent=11 // pred_region
          _
        $region36: #{tpu_custom_call.1} parent=11 // pred_fallthru
          _
        // Predicated region
        $region37: #{tpu_custom_call.1} parent=11 // pred_check
          %p318 = pneg %p196
        $region38: #{tpu_custom_call.1} parent=11 // pred_check_branch
          %320 = sbr.rel (%p318) target = $region40
        $region39: #{tpu_custom_call.1} parent=11 // pred_region
          _
        $region40: #{tpu_custom_call.1} parent=11 // pred_fallthru
          _
        // Predicated region
        $region41: #{tpu_custom_call.1} parent=11 // pred_check
          %p321 = pneg %p217
        $region42: #{tpu_custom_call.1} parent=11 // pred_check_branch
          %323 = sbr.rel (%p321) target = $region44
        $region43: #{tpu_custom_call.1} parent=11 // pred_region
          _
        $region44: #{tpu_custom_call.1} parent=11 // pred_fallthru
          _
        // Predicated region
        $region45: #{tpu_custom_call.1} parent=11 // pred_check
          %p324 = pneg %p238
        $region46: #{tpu_custom_call.1} parent=11 // pred_check_branch
          %326 = sbr.rel (%p324) target = $region48
        $region47: #{tpu_custom_call.1} parent=11 // pred_region
          _
        $region48: #{tpu_custom_call.1} parent=11 // pred_fallthru
          _
        // Predicated region
        $region49: #{tpu_custom_call.1} parent=11 // pred_check
          %p327 = pneg %p259
        $region50: #{tpu_custom_call.1} parent=11 // pred_check_branch
          %329 = sbr.rel (%p327) target = $region52
        $region51: #{tpu_custom_call.1} parent=11 // pred_region
          _
        $region52: #{tpu_custom_call.1} parent=11 // pred_fallthru
          _
      $region12: #{tpu_custom_call.1} parent=5 // pred_fallthru
        _
      %p330 = scmp.lt.s32.totalorder %s23, 2
      // Predicated region
      $region53: #{tpu_custom_call.1} parent=5 // pred_check
        %p331 = pneg %p330
      $region54: #{tpu_custom_call.1} parent=5 // pred_check_branch
        %333 = sbr.rel (%p331) target = $region56
      $region55: #{tpu_custom_call.1} parent=5 // pred_region
        // Predicated region
        $region57: #{tpu_custom_call.1} parent=55 // pred_check
          %p334 = pneg %p43
        $region58: #{tpu_custom_call.1} parent=55 // pred_check_branch
          %336 = sbr.rel (%p334) target = $region60
        $region59: #{tpu_custom_call.1} parent=55 // pred_region
          %s337 = sand.u32 %s33, 1
          %s338 = scalar_lea.sflag [#allocation3], %s337
          %s339 = sand.u32 %s33, 1
          %s340 = smul.addr %s339, 64
          %s341 = scalar_lea.vmem [#allocation2], %s340
          %343 = vsyncadd %s338, 0
          %s344 = smul.addr %s23, 8
          %s345 = smul.addr %s344, 8
          %s346 = scalar_lea.hbm %s0, %s345
          %s347 = sshll.u32 %s346, 4
          %s348 = int_to_ptr.hbm [resolvable:$true] %s347
          %s349 = sshll.u32 %s341, 4
          %s350 = int_to_ptr.vmem [resolvable:$true] %s349
          %355 = dma.hbm_to_vmem [thread:$0]  %s348, 1024, %s350, %s338, 256, 256, 16
        $region60: #{tpu_custom_call.1} parent=55 // pred_fallthru
          _
      $region56: #{tpu_custom_call.1} parent=5 // pred_fallthru
        _
      %p356 = scmp.le.s32.totalorder 1, %s23
      %p357 = scmp.lt.s32.totalorder %s23, 3
      %p358 = pnand %p356, %p357
      %p359 = pneg %p358
      // Predicated region
      $region61: #{tpu_custom_call.1} parent=5 // pred_check
        _
      $region62: #{tpu_custom_call.1} parent=5 // pred_check_branch
        %361 = sbr.rel (%p358) target = $region64
      $region63: #{tpu_custom_call.1} parent=5 // pred_region
        %s362 = ssub.s32 %s23, 1
        %s363 = sand.u32 %s36, 1
        %s364 = scalar_lea.sflag [#allocation3], %s363
        %s365 = sand.u32 %s36, 1
        %s366 = smul.addr %s365, 64
        %s367 = scalar_lea.vmem [#allocation2], %s366
        // Predicated region
        $region65: #{tpu_custom_call.1} parent=63 // pred_check
          %p368 = pneg %p49
        $region66: #{tpu_custom_call.1} parent=63 // pred_check_branch
          %370 = sbr.rel (%p368) target = $region68
        $region67: #{tpu_custom_call.1} parent=63 // pred_region
          %372 = dma.done %s364, 1024
        $region68: #{tpu_custom_call.1} parent=63 // pred_fallthru
          _
        %s373 = sand.u32 %s36, 1
        %s374 = scalar_lea.sflag [#allocation3], %s373
        %s375 = sand.u32 %s36, 1
        %s376 = smul.addr %s375, 64
        %s377 = scalar_lea.vmem [#allocation2], %s376
        %p378 = pneg %p49
        %p379 = pneg %p46
        %p380 = pneg %p70
        %p381 = pneg %p67
        %p382 = pneg %p91
        %p383 = pneg %p88
        %p384 = pneg %p112
        %p385 = pneg %p109
        %p386 = pneg %p133
        %p387 = pneg %p130
        %p388 = pneg %p154
        %p389 = pneg %p151
        %p390 = pneg %p175
        %p391 = pneg %p172
        %p392 = pneg %p196
        %p393 = pneg %p193
        %p394 = pneg %p217
        %p395 = pneg %p214
        %p396 = pneg %p238
        %p397 = pneg %p235
        %p398 = pneg %p259
        %p399 = pneg %p256
        %p400 = pneg %p285
        %p401 = pneg %p282
        %s402 = sand.u32 %s272, 1
        %s403 = scalar_lea.sflag [#allocation4], %s402
        %s404 = sand.u32 %s272, 1
        %s405 = smul.addr %s404, 128
        %s406 = scalar_lea.vmem [#allocation5], %s405
        %v407 = vld [vmem:[%s367] sm:$0xff]
        %v408 = vld [vmem:[%s367 + $0x8] sm:$0xff]
        %v409 = vld [vmem:[%s367 + $0x10] sm:$0xff]
        %v410 = vld [vmem:[%s367 + $0x18] sm:$0xff]
        %v411 = vld [vmem:[%s367 + $0x20] sm:$0xff]
        %v412 = vld [vmem:[%s367 + $0x28] sm:$0xff]
        %v413 = vld [vmem:[%s367 + $0x30] sm:$0xff]
        %v414 = vld [vmem:[%s367 + $0x38] sm:$0xff]
        %v415 = vld [vmem:[%s1] sm:$0xff]
        %vm416 = vcmask 261120
        %v418 = vsel %vm416, %v415, 0
        %420 = vmatpush.msra.mxu0 0.0
        %421 = vmatpush.msra.mxu0 0.0
        %422 = vmatpush.msra.mxu0 0.0
        %423 = vmatpush.msra.mxu0 0.0
        %424 = vmatpush.msra.mxu0 0.0
        %425 = vmatpush.msra.mxu0 0.0
        %426 = vmatpush.msra.mxu0 0.0
        %427 = vmatpush.msra.mxu0 0.0
        %428 = vmatpush.msra.mxu0 0.0
        %429 = vmatpush.msra.mxu0 0.0
        %430 = vmatpush.msra.mxu0 0.0
        %431 = vmatpush.msra.mxu0 0.0
        %432 = vmatpush.msra.mxu0 %v413
        %433 = vmatpush.msra.mxu0 %v411
        %434 = vmatpush.msra.mxu0 %v409
        %435 = vmatpush.msra.mxu0 %v407
        %436 = vmatmul.f32.gmra.mxu0 %v418
        %v437 = vpop.f32.mrf.mxu0
        %v438 = vadd.f32 0.0, %v437
        %439 = vdwg.mxu0
        %440 = vmatpush.msra.mxu0 0.0
        %441 = vmatpush.msra.mxu0 0.0
        %442 = vmatpush.msra.mxu0 0.0
        %443 = vmatpush.msra.mxu0 0.0
        %444 = vmatpush.msra.mxu0 0.0
        %445 = vmatpush.msra.mxu0 0.0
        %446 = vmatpush.msra.mxu0 0.0
        %447 = vmatpush.msra.mxu0 0.0
        %448 = vmatpush.msra.mxu0 0.0
        %449 = vmatpush.msra.mxu0 0.0
        %450 = vmatpush.msra.mxu0 0.0
        %451 = vmatpush.msra.mxu0 0.0
        %452 = vmatpush.msra.mxu0 %v414
        %453 = vmatpush.msra.mxu0 %v412
        %454 = vmatpush.msra.mxu0 %v410
        %455 = vmatpush.msra.mxu0 %v408
        %456 = vmatmul.f32.gmra.mxu0 %v418
        %v457 = vpop.f32.mrf.mxu0
        %v458 = vadd.f32 0.0, %v457
        %459 = vdwg.mxu0
        %v460 = vld [vmem:[%s2] sm:$0xff]
        %462 = vset.pattern.permute.xlu0 0
        %463 = vperm.xlu0 %462, %v460
        %v464 = vpop.permute.xlu0 %463
        %v466 = vmul.f32 %v438, %v464
        %v467 = vmul.f32 %v458, %v464
        %v468 = vld [vmem:[%s3] sm:$0xff]
        %470 = vset.pattern.permute.xlu0 0
        %471 = vperm.xlu0 %470, %v468
        %v472 = vpop.permute.xlu0 %471
        %v474 = vadd.f32 %v466, %v472
        %v475 = vadd.f32 %v467, %v472
        %v476 = vmax.f32 %v474, 0.0
        %v477 = vmax.f32 %v475, 0.0
        %479 = vrot.lane.b32.xlu0 %v477, 17
        %v480 = vpop.permute.xlu0 %479
        %483 = vrot.lane.b32.xlu0 %v476, 17
        %v484 = vpop.permute.xlu0 %483
        %vm485 = vcmask 138240
        %v486 = vsel %vm485, %v484, %v480
        %v489 = vsel %vm485, %v480, %v484
        %v490 = vld [vmem:[%s10] sm:$0x3]
        %v492 = vperm.slane %v490, 0
        %v493 = vperm.slane %v490, 1
        %v496 = vmul.f32 %v489, %v492
        %v497 = vmul.f32 %v486, %v493
        %498 = vrot.lane.b32.xlu0 %v477, 16
        %v499 = vpop.permute.xlu0 %498
        %501 = vrot.lane.b32.xlu0 %v476, 16
        %v502 = vpop.permute.xlu0 %501
        %vm503 = vcmask 130048
        %v504 = vsel %vm503, %v502, %v499
        %v507 = vsel %vm503, %v499, %v502
        %s508 = scalar_lea.vmem %s10, 2
        %v509 = vld [vmem:[%s508] sm:$0x3]
        %v511 = vperm.slane %v509, 0
        %v512 = vperm.slane %v509, 1
        %v515 = vmul.f32 %v507, %v511
        %v516 = vmul.f32 %v504, %v512
        %517 = vrot.lane.b32.xlu0 %v477, 15
        %v518 = vpop.permute.xlu0 %517
        %520 = vrot.lane.b32.xlu0 %v476, 15
        %v521 = vpop.permute.xlu0 %520
        %vm522 = vcmask 121856
        %v523 = vsel %vm522, %v521, %v518
        %v526 = vsel %vm522, %v518, %v521
        %s527 = scalar_lea.vmem %s10, 4
        %v528 = vld [vmem:[%s527] sm:$0x3]
        %v530 = vperm.slane %v528, 0
        %v531 = vperm.slane %v528, 1
        %v534 = vmul.f32 %v526, %v530
        %v535 = vmul.f32 %v523, %v531
        %536 = vrot.lane.b32.xlu0 %v477, 1
        %v537 = vpop.permute.xlu0 %536
        %539 = vrot.lane.b32.xlu0 %v476, 1
        %v540 = vpop.permute.xlu0 %539
        %vm541 = vcmask 7168
        %v542 = vsel %vm541, %v540, %v537
        %v545 = vsel %vm541, %v537, %v540
        %s546 = scalar_lea.vmem %s10, 6
        %v547 = vld [vmem:[%s546] sm:$0x3]
        %v549 = vperm.slane %v547, 0
        %v550 = vperm.slane %v547, 1
        %v553 = vmul.f32 %v545, %v549
        %v554 = vmul.f32 %v542, %v550
        %555 = vrot.lane.b32.xlu0 %v476, 127
        %v556 = vpop.permute.xlu0 %555
        %557 = vrot.lane.b32.xlu0 %v477, 127
        %v558 = vpop.permute.xlu0 %557
        %vm559 = vcmask 1039360
        %v560 = vsel %vm559, %v556, %v558
        %v564 = vsel %vm559, %v558, %v556
        %s565 = scalar_lea.vmem %s10, 8
        %v566 = vld [vmem:[%s565] sm:$0x3]
        %v568 = vperm.slane %v566, 0
        %v569 = vperm.slane %v566, 1
        %v572 = vmul.f32 %v560, %v568
        %v573 = vmul.f32 %v564, %v569
        %574 = vrot.lane.b32.xlu0 %v476, 113
        %v575 = vpop.permute.xlu0 %574
        %576 = vrot.lane.b32.xlu0 %v477, 113
        %v577 = vpop.permute.xlu0 %576
        %vm578 = vcmask 924672
        %v579 = vsel %vm578, %v575, %v577
        %v583 = vsel %vm578, %v577, %v575
        %s584 = scalar_lea.vmem %s10, 10
        %v585 = vld [vmem:[%s584] sm:$0x3]
        %v587 = vperm.slane %v585, 0
        %v588 = vperm.slane %v585, 1
        %v591 = vmul.f32 %v579, %v587
        %v592 = vmul.f32 %v583, %v588
        %593 = vrot.lane.b32.xlu0 %v476, 112
        %v594 = vpop.permute.xlu0 %593
        %595 = vrot.lane.b32.xlu0 %v477, 112
        %v596 = vpop.permute.xlu0 %595
        %vm597 = vcmask 916480
        %v598 = vsel %vm597, %v594, %v596
        %v602 = vsel %vm597, %v596, %v594
        %s603 = scalar_lea.vmem %s10, 12
        %v604 = vld [vmem:[%s603] sm:$0x3]
        %v606 = vperm.slane %v604, 0
        %v607 = vperm.slane %v604, 1
        %v610 = vmul.f32 %v598, %v606
        %v611 = vmul.f32 %v602, %v607
        %612 = vrot.lane.b32.xlu0 %v476, 111
        %v613 = vpop.permute.xlu0 %612
        %614 = vrot.lane.b32.xlu0 %v477, 111
        %v615 = vpop.permute.xlu0 %614
        %vm616 = vcmask 908288
        %v617 = vsel %vm616, %v613, %v615
        %v621 = vsel %vm616, %v615, %v613
        %s622 = scalar_lea.vmem %s10, 14
        %v623 = vld [vmem:[%s622] sm:$0x3]
        %v625 = vperm.slane %v623, 0
        %v626 = vperm.slane %v623, 1
        %v629 = vmul.f32 %v617, %v625
        %v630 = vmul.f32 %v621, %v626
        %v631 = vld [vmem:[%s4] sm:$0xff]
        %v633 = vsel %vm416, %v631, 0
        %635 = vmatpush.msra.mxu0 0.0
        %636 = vmatpush.msra.mxu0 0.0
        %637 = vmatpush.msra.mxu0 0.0
        %638 = vmatpush.msra.mxu0 0.0
        %639 = vmatpush.msra.mxu0 0.0
        %640 = vmatpush.msra.mxu0 0.0
        %641 = vmatpush.msra.mxu0 0.0
        %642 = vmatpush.msra.mxu0 0.0
        %643 = vmatpush.msra.mxu0 0.0
        %644 = vmatpush.msra.mxu0 0.0
        %645 = vmatpush.msra.mxu0 0.0
        %646 = vmatpush.msra.mxu0 0.0
        %647 = vmatpush.msra.mxu0 %v496
        %648 = vmatpush.msra.mxu0 %v515
        %649 = vmatpush.msra.mxu0 %v553
        %650 = vmatpush.msra.mxu0 %v476
        %651 = vmatmul.f32.gmra.mxu0 %v633
        %v652 = vpop.f32.mrf.mxu0
        %v653 = vadd.f32 0.0, %v652
        %654 = vdwg.mxu0
        %655 = vmatpush.msra.mxu0 0.0
        %656 = vmatpush.msra.mxu0 0.0
        %657 = vmatpush.msra.mxu0 0.0
        %658 = vmatpush.msra.mxu0 0.0
        %659 = vmatpush.msra.mxu0 0.0
        %660 = vmatpush.msra.mxu0 0.0
        %661 = vmatpush.msra.mxu0 0.0
        %662 = vmatpush.msra.mxu0 0.0
        %663 = vmatpush.msra.mxu0 0.0
        %664 = vmatpush.msra.mxu0 0.0
        %665 = vmatpush.msra.mxu0 0.0
        %666 = vmatpush.msra.mxu0 0.0
        %667 = vmatpush.msra.mxu0 %v497
        %668 = vmatpush.msra.mxu0 %v516
        %669 = vmatpush.msra.mxu0 %v554
        %670 = vmatpush.msra.mxu0 %v477
        %671 = vmatmul.f32.gmra.mxu0 %v633
        %v672 = vpop.f32.mrf.mxu0
        %v673 = vadd.f32 0.0, %v672
        %674 = vdwg.mxu0
        %s675 = scalar_lea.vmem %s4, 8
        %v676 = vld [vmem:[%s675] sm:$0xff]
        %v678 = vsel %vm416, %v676, 0
        %680 = vmatpush.msra.mxu0 0.0
        %681 = vmatpush.msra.mxu0 0.0
        %682 = vmatpush.msra.mxu0 0.0
        %683 = vmatpush.msra.mxu0 0.0
        %684 = vmatpush.msra.mxu0 0.0
        %685 = vmatpush.msra.mxu0 0.0
        %686 = vmatpush.msra.mxu0 0.0
        %687 = vmatpush.msra.mxu0 0.0
        %688 = vmatpush.msra.mxu0 0.0
        %689 = vmatpush.msra.mxu0 0.0
        %690 = vmatpush.msra.mxu0 0.0
        %691 = vmatpush.msra.mxu0 0.0
        %692 = vmatpush.msra.mxu0 %v534
        %693 = vmatpush.msra.mxu0 %v515
        %694 = vmatpush.msra.mxu0 %v572
        %695 = vmatpush.msra.mxu0 %v476
        %696 = vmatmul.f32.gmra.mxu0 %v678
        %v697 = vpop.f32.mrf.mxu0
        %v698 = vadd.f32 0.0, %v697
        %699 = vdwg.mxu0
        %700 = vmatpush.msra.mxu0 0.0
        %701 = vmatpush.msra.mxu0 0.0
        %702 = vmatpush.msra.mxu0 0.0
        %703 = vmatpush.msra.mxu0 0.0
        %704 = vmatpush.msra.mxu0 0.0
        %705 = vmatpush.msra.mxu0 0.0
        %706 = vmatpush.msra.mxu0 0.0
        %707 = vmatpush.msra.mxu0 0.0
        %708 = vmatpush.msra.mxu0 0.0
        %709 = vmatpush.msra.mxu0 0.0
        %710 = vmatpush.msra.mxu0 0.0
        %711 = vmatpush.msra.mxu0 0.0
        %712 = vmatpush.msra.mxu0 %v535
        %713 = vmatpush.msra.mxu0 %v516
        %714 = vmatpush.msra.mxu0 %v573
        %715 = vmatpush.msra.mxu0 %v477
        %716 = vmatmul.f32.gmra.mxu0 %v678
        %v717 = vpop.f32.mrf.mxu0
        %v718 = vadd.f32 0.0, %v717
        %719 = vdwg.mxu0
        %s720 = scalar_lea.vmem %s4, 16
        %v721 = vld [vmem:[%s720] sm:$0xff]
        %v723 = vsel %vm416, %v721, 0
        %725 = vmatpush.msra.mxu0 0.0
        %726 = vmatpush.msra.mxu0 0.0
        %727 = vmatpush.msra.mxu0 0.0
        %728 = vmatpush.msra.mxu0 0.0
        %729 = vmatpush.msra.mxu0 0.0
        %730 = vmatpush.msra.mxu0 0.0
        %731 = vmatpush.msra.mxu0 0.0
        %732 = vmatpush.msra.mxu0 0.0
        %733 = vmatpush.msra.mxu0 0.0
        %734 = vmatpush.msra.mxu0 0.0
        %735 = vmatpush.msra.mxu0 0.0
        %736 = vmatpush.msra.mxu0 0.0
        %737 = vmatpush.msra.mxu0 %v591
        %738 = vmatpush.msra.mxu0 %v610
        %739 = vmatpush.msra.mxu0 %v553
        %740 = vmatpush.msra.mxu0 %v476
        %741 = vmatmul.f32.gmra.mxu0 %v723
        %v742 = vpop.f32.mrf.mxu0
        %v743 = vadd.f32 0.0, %v742
        %744 = vdwg.mxu0
        %745 = vmatpush.msra.mxu0 0.0
        %746 = vmatpush.msra.mxu0 0.0
        %747 = vmatpush.msra.mxu0 0.0
        %748 = vmatpush.msra.mxu0 0.0
        %749 = vmatpush.msra.mxu0 0.0
        %750 = vmatpush.msra.mxu0 0.0
        %751 = vmatpush.msra.mxu0 0.0
        %752 = vmatpush.msra.mxu0 0.0
        %753 = vmatpush.msra.mxu0 0.0
        %754 = vmatpush.msra.mxu0 0.0
        %755 = vmatpush.msra.mxu0 0.0
        %756 = vmatpush.msra.mxu0 0.0
        %757 = vmatpush.msra.mxu0 %v592
        %758 = vmatpush.msra.mxu0 %v611
        %759 = vmatpush.msra.mxu0 %v554
        %760 = vmatpush.msra.mxu0 %v477
        %761 = vmatmul.f32.gmra.mxu0 %v723
        %v762 = vpop.f32.mrf.mxu0
        %v763 = vadd.f32 0.0, %v762
        %764 = vdwg.mxu0
        %s765 = scalar_lea.vmem %s4, 24
        %v766 = vld [vmem:[%s765] sm:$0xff]
        %v768 = vsel %vm416, %v766, 0
        %770 = vmatpush.msra.mxu0 0.0
        %771 = vmatpush.msra.mxu0 0.0
        %772 = vmatpush.msra.mxu0 0.0
        %773 = vmatpush.msra.mxu0 0.0
        %774 = vmatpush.msra.mxu0 0.0
        %775 = vmatpush.msra.mxu0 0.0
        %776 = vmatpush.msra.mxu0 0.0
        %777 = vmatpush.msra.mxu0 0.0
        %778 = vmatpush.msra.mxu0 0.0
        %779 = vmatpush.msra.mxu0 0.0
        %780 = vmatpush.msra.mxu0 0.0
        %781 = vmatpush.msra.mxu0 0.0
        %782 = vmatpush.msra.mxu0 %v629
        %783 = vmatpush.msra.mxu0 %v610
        %784 = vmatpush.msra.mxu0 %v572
        %785 = vmatpush.msra.mxu0 %v476
        %786 = vmatmul.f32.gmra.mxu0 %v768
        %v787 = vpop.f32.mrf.mxu0
        %v788 = vadd.f32 0.0, %v787
        %789 = vdwg.mxu0
        %790 = vmatpush.msra.mxu0 0.0
        %791 = vmatpush.msra.mxu0 0.0
        %792 = vmatpush.msra.mxu0 0.0
        %793 = vmatpush.msra.mxu0 0.0
        %794 = vmatpush.msra.mxu0 0.0
        %795 = vmatpush.msra.mxu0 0.0
        %796 = vmatpush.msra.mxu0 0.0
        %797 = vmatpush.msra.mxu0 0.0
        %798 = vmatpush.msra.mxu0 0.0
        %799 = vmatpush.msra.mxu0 0.0
        %800 = vmatpush.msra.mxu0 0.0
        %801 = vmatpush.msra.mxu0 0.0
        %802 = vmatpush.msra.mxu0 %v630
        %803 = vmatpush.msra.mxu0 %v611
        %804 = vmatpush.msra.mxu0 %v573
        %805 = vmatpush.msra.mxu0 %v477
        %806 = vmatmul.f32.gmra.mxu0 %v768
        %v807 = vpop.f32.mrf.mxu0
        %v808 = vadd.f32 0.0, %v807
        %809 = vdwg.mxu0
        %v810 = vld [vmem:[%s5] sm:$0xff]
        %812 = vset.pattern.permute.xlu0 0
        %813 = vperm.xlu0 %812, %v810
        %v814 = vpop.permute.xlu0 %813
        %v816 = vmul.f32 %v653, %v814
        %v817 = vmul.f32 %v673, %v814
        %v818 = vmul.f32 %v698, %v814
        %v819 = vmul.f32 %v718, %v814
        %v820 = vmul.f32 %v743, %v814
        %v821 = vmul.f32 %v763, %v814
        %v822 = vmul.f32 %v788, %v814
        %v823 = vmul.f32 %v808, %v814
        %v824 = vld [vmem:[%s6] sm:$0xff]
        %826 = vset.pattern.permute.xlu0 0
        %827 = vperm.xlu0 %826, %v824
        %v828 = vpop.permute.xlu0 %827
        %v830 = vadd.f32 %v816, %v828
        %v831 = vadd.f32 %v817, %v828
        %v832 = vadd.f32 %v818, %v828
        %v833 = vadd.f32 %v819, %v828
        %v834 = vadd.f32 %v820, %v828
        %v835 = vadd.f32 %v821, %v828
        %v836 = vadd.f32 %v822, %v828
        %v837 = vadd.f32 %v823, %v828
        %v838 = vmax.f32 %v830, 0.0
        %v839 = vmax.f32 %v831, 0.0
        %v840 = vmax.f32 %v832, 0.0
        %v841 = vmax.f32 %v833, 0.0
        %v842 = vmax.f32 %v834, 0.0
        %v843 = vmax.f32 %v835, 0.0
        %v844 = vmax.f32 %v836, 0.0
        %v845 = vmax.f32 %v837, 0.0
        %v846 = vld [vmem:[%s7] sm:$0xff]
        %v847 = vld [vmem:[%s7 + $0x8] sm:$0xff]
        %vm848 = vcmask 64512
        %v850 = vsel %vm848, %v846, 0
        %v853 = vsel %vm848, %v847, 0
        %855 = vmatpush.msra.mxu0 0.0
        %856 = vmatpush.msra.mxu0 0.0
        %857 = vmatpush.msra.mxu0 0.0
        %858 = vmatpush.msra.mxu0 0.0
        %859 = vmatpush.msra.mxu0 0.0
        %860 = vmatpush.msra.mxu0 0.0
        %861 = vmatpush.msra.mxu0 0.0
        %862 = vmatpush.msra.mxu0 0.0
        %863 = vmatpush.msra.mxu0 0.0
        %864 = vmatpush.msra.mxu0 0.0
        %865 = vmatpush.msra.mxu0 0.0
        %866 = vmatpush.msra.mxu0 0.0
        %867 = vmatpush.msra.mxu0 0.0
        %868 = vmatpush.msra.mxu0 0.0
        %869 = vmatpush.msra.mxu0 0.0
        %870 = vmatpush.msra.mxu0 %v838
        %871 = vmatmul.f32.gmra.mxu0 %v850
        %v872 = vpop.f32.mrf.mxu0
        %v873 = vadd.f32 0.0, %v872
        %874 = vmatmul.f32.gmra.mxu0 %v853
        %v875 = vpop.f32.mrf.mxu0
        %v876 = vadd.f32 0.0, %v875
        %877 = vdwg.mxu0
        %878 = vmatpush.msra.mxu0 0.0
        %879 = vmatpush.msra.mxu0 0.0
        %880 = vmatpush.msra.mxu0 0.0
        %881 = vmatpush.msra.mxu0 0.0
        %882 = vmatpush.msra.mxu0 0.0
        %883 = vmatpush.msra.mxu0 0.0
        %884 = vmatpush.msra.mxu0 0.0
        %885 = vmatpush.msra.mxu0 0.0
        %886 = vmatpush.msra.mxu0 0.0
        %887 = vmatpush.msra.mxu0 0.0
        %888 = vmatpush.msra.mxu0 0.0
        %889 = vmatpush.msra.mxu0 0.0
        %890 = vmatpush.msra.mxu0 0.0
        %891 = vmatpush.msra.mxu0 0.0
        %892 = vmatpush.msra.mxu0 0.0
        %893 = vmatpush.msra.mxu0 %v839
        %894 = vmatmul.f32.gmra.mxu0 %v850
        %v895 = vpop.f32.mrf.mxu0
        %v896 = vadd.f32 0.0, %v895
        %897 = vmatmul.f32.gmra.mxu0 %v853
        %v898 = vpop.f32.mrf.mxu0
        %v899 = vadd.f32 0.0, %v898
        %900 = vdwg.mxu0
        %901 = vmatpush.msra.mxu0 0.0
        %902 = vmatpush.msra.mxu0 0.0
        %903 = vmatpush.msra.mxu0 0.0
        %904 = vmatpush.msra.mxu0 0.0
        %905 = vmatpush.msra.mxu0 0.0
        %906 = vmatpush.msra.mxu0 0.0
        %907 = vmatpush.msra.mxu0 0.0
        %908 = vmatpush.msra.mxu0 0.0
        %909 = vmatpush.msra.mxu0 0.0
        %910 = vmatpush.msra.mxu0 0.0
        %911 = vmatpush.msra.mxu0 0.0
        %912 = vmatpush.msra.mxu0 0.0
        %913 = vmatpush.msra.mxu0 0.0
        %914 = vmatpush.msra.mxu0 0.0
        %915 = vmatpush.msra.mxu0 0.0
        %916 = vmatpush.msra.mxu0 %v840
        %917 = vmatmul.f32.gmra.mxu0 %v850
        %v918 = vpop.f32.mrf.mxu0
        %v919 = vadd.f32 0.0, %v918
        %920 = vmatmul.f32.gmra.mxu0 %v853
        %v921 = vpop.f32.mrf.mxu0
        %v922 = vadd.f32 0.0, %v921
        %923 = vdwg.mxu0
        %924 = vmatpush.msra.mxu0 0.0
        %925 = vmatpush.msra.mxu0 0.0
        %926 = vmatpush.msra.mxu0 0.0
        %927 = vmatpush.msra.mxu0 0.0
        %928 = vmatpush.msra.mxu0 0.0
        %929 = vmatpush.msra.mxu0 0.0
        %930 = vmatpush.msra.mxu0 0.0
        %931 = vmatpush.msra.mxu0 0.0
        %932 = vmatpush.msra.mxu0 0.0
        %933 = vmatpush.msra.mxu0 0.0
        %934 = vmatpush.msra.mxu0 0.0
        %935 = vmatpush.msra.mxu0 0.0
        %936 = vmatpush.msra.mxu0 0.0
        %937 = vmatpush.msra.mxu0 0.0
        %938 = vmatpush.msra.mxu0 0.0
        %939 = vmatpush.msra.mxu0 %v841
        %940 = vmatmul.f32.gmra.mxu0 %v850
        %v941 = vpop.f32.mrf.mxu0
        %v942 = vadd.f32 0.0, %v941
        %943 = vmatmul.f32.gmra.mxu0 %v853
        %v944 = vpop.f32.mrf.mxu0
        %v945 = vadd.f32 0.0, %v944
        %946 = vdwg.mxu0
        %947 = vmatpush.msra.mxu0 0.0
        %948 = vmatpush.msra.mxu0 0.0
        %949 = vmatpush.msra.mxu0 0.0
        %950 = vmatpush.msra.mxu0 0.0
        %951 = vmatpush.msra.mxu0 0.0
        %952 = vmatpush.msra.mxu0 0.0
        %953 = vmatpush.msra.mxu0 0.0
        %954 = vmatpush.msra.mxu0 0.0
        %955 = vmatpush.msra.mxu0 0.0
        %956 = vmatpush.msra.mxu0 0.0
        %957 = vmatpush.msra.mxu0 0.0
        %958 = vmatpush.msra.mxu0 0.0
        %959 = vmatpush.msra.mxu0 0.0
        %960 = vmatpush.msra.mxu0 0.0
        %961 = vmatpush.msra.mxu0 0.0
        %962 = vmatpush.msra.mxu0 %v842
        %963 = vmatmul.f32.gmra.mxu0 %v850
        %v964 = vpop.f32.mrf.mxu0
        %v965 = vadd.f32 0.0, %v964
        %966 = vmatmul.f32.gmra.mxu0 %v853
        %v967 = vpop.f32.mrf.mxu0
        %v968 = vadd.f32 0.0, %v967
        %969 = vdwg.mxu0
        %970 = vmatpush.msra.mxu0 0.0
        %971 = vmatpush.msra.mxu0 0.0
        %972 = vmatpush.msra.mxu0 0.0
        %973 = vmatpush.msra.mxu0 0.0
        %974 = vmatpush.msra.mxu0 0.0
        %975 = vmatpush.msra.mxu0 0.0
        %976 = vmatpush.msra.mxu0 0.0
        %977 = vmatpush.msra.mxu0 0.0
        %978 = vmatpush.msra.mxu0 0.0
        %979 = vmatpush.msra.mxu0 0.0
        %980 = vmatpush.msra.mxu0 0.0
        %981 = vmatpush.msra.mxu0 0.0
        %982 = vmatpush.msra.mxu0 0.0
        %983 = vmatpush.msra.mxu0 0.0
        %984 = vmatpush.msra.mxu0 0.0
        %985 = vmatpush.msra.mxu0 %v843
        %986 = vmatmul.f32.gmra.mxu0 %v850
        %v987 = vpop.f32.mrf.mxu0
        %v988 = vadd.f32 0.0, %v987
        %989 = vmatmul.f32.gmra.mxu0 %v853
        %v990 = vpop.f32.mrf.mxu0
        %v991 = vadd.f32 0.0, %v990
        %992 = vdwg.mxu0
        %993 = vmatpush.msra.mxu0 0.0
        %994 = vmatpush.msra.mxu0 0.0
        %995 = vmatpush.msra.mxu0 0.0
        %996 = vmatpush.msra.mxu0 0.0
        %997 = vmatpush.msra.mxu0 0.0
        %998 = vmatpush.msra.mxu0 0.0
        %999 = vmatpush.msra.mxu0 0.0
        %1000 = vmatpush.msra.mxu0 0.0
        %1001 = vmatpush.msra.mxu0 0.0
        %1002 = vmatpush.msra.mxu0 0.0
        %1003 = vmatpush.msra.mxu0 0.0
        %1004 = vmatpush.msra.mxu0 0.0
        %1005 = vmatpush.msra.mxu0 0.0
        %1006 = vmatpush.msra.mxu0 0.0
        %1007 = vmatpush.msra.mxu0 0.0
        %1008 = vmatpush.msra.mxu0 %v844
        %1009 = vmatmul.f32.gmra.mxu0 %v850
        %v1010 = vpop.f32.mrf.mxu0
        %v1011 = vadd.f32 0.0, %v1010
        %1012 = vmatmul.f32.gmra.mxu0 %v853
        %v1013 = vpop.f32.mrf.mxu0
        %v1014 = vadd.f32 0.0, %v1013
        %1015 = vdwg.mxu0
        %1016 = vmatpush.msra.mxu0 0.0
        %1017 = vmatpush.msra.mxu0 0.0
        %1018 = vmatpush.msra.mxu0 0.0
        %1019 = vmatpush.msra.mxu0 0.0
        %1020 = vmatpush.msra.mxu0 0.0
        %1021 = vmatpush.msra.mxu0 0.0
        %1022 = vmatpush.msra.mxu0 0.0
        %1023 = vmatpush.msra.mxu0 0.0
        %1024 = vmatpush.msra.mxu0 0.0
        %1025 = vmatpush.msra.mxu0 0.0
        %1026 = vmatpush.msra.mxu0 0.0
        %1027 = vmatpush.msra.mxu0 0.0
        %1028 = vmatpush.msra.mxu0 0.0
        %1029 = vmatpush.msra.mxu0 0.0
        %1030 = vmatpush.msra.mxu0 0.0
        %1031 = vmatpush.msra.mxu0 %v845
        %1032 = vmatmul.f32.gmra.mxu0 %v850
        %v1033 = vpop.f32.mrf.mxu0
        %v1034 = vadd.f32 0.0, %v1033
        %1035 = vmatmul.f32.gmra.mxu0 %v853
        %v1036 = vpop.f32.mrf.mxu0
        %v1037 = vadd.f32 0.0, %v1036
        %1038 = vdwg.mxu0
        %v1039 = vld [vmem:[%s8] sm:$0xff]
        %v1040 = vld [vmem:[%s8 + $0x8] sm:$0xff]
        %1042 = vset.pattern.permute.xlu0 0
        %1043 = vperm.xlu0 %1042, %v1039
        %v1044 = vpop.permute.xlu0 %1043
        %1047 = vset.pattern.permute.xlu0 0
        %1048 = vperm.xlu0 %1047, %v1040
        %v1049 = vpop.permute.xlu0 %1048
        %v1051 = vmul.f32 %v873, %v1044
        %v1052 = vmul.f32 %v896, %v1044
        %v1053 = vmul.f32 %v919, %v1044
        %v1054 = vmul.f32 %v942, %v1044
        %v1055 = vmul.f32 %v965, %v1044
        %v1056 = vmul.f32 %v988, %v1044
        %v1057 = vmul.f32 %v1011, %v1044
        %v1058 = vmul.f32 %v1034, %v1044
        %v1059 = vmul.f32 %v876, %v1049
        %v1060 = vmul.f32 %v899, %v1049
        %v1061 = vmul.f32 %v922, %v1049
        %v1062 = vmul.f32 %v945, %v1049
        %v1063 = vmul.f32 %v968, %v1049
        %v1064 = vmul.f32 %v991, %v1049
        %v1065 = vmul.f32 %v1014, %v1049
        %v1066 = vmul.f32 %v1037, %v1049
        %v1067 = vld [vmem:[%s9] sm:$0xff]
        %v1068 = vld [vmem:[%s9 + $0x8] sm:$0xff]
        %1070 = vset.pattern.permute.xlu0 0
        %1071 = vperm.xlu0 %1070, %v1067
        %v1072 = vpop.permute.xlu0 %1071
        %1075 = vset.pattern.permute.xlu0 0
        %1076 = vperm.xlu0 %1075, %v1068
        %v1077 = vpop.permute.xlu0 %1076
        %v1079 = vadd.f32 %v1051, %v1072
        %v1080 = vadd.f32 %v1052, %v1072
        %v1081 = vadd.f32 %v1053, %v1072
        %v1082 = vadd.f32 %v1054, %v1072
        %v1083 = vadd.f32 %v1055, %v1072
        %v1084 = vadd.f32 %v1056, %v1072
        %v1085 = vadd.f32 %v1057, %v1072
        %v1086 = vadd.f32 %v1058, %v1072
        %v1087 = vadd.f32 %v1059, %v1077
        %v1088 = vadd.f32 %v1060, %v1077
        %v1089 = vadd.f32 %v1061, %v1077
        %v1090 = vadd.f32 %v1062, %v1077
        %v1091 = vadd.f32 %v1063, %v1077
        %v1092 = vadd.f32 %v1064, %v1077
        %v1093 = vadd.f32 %v1065, %v1077
        %v1094 = vadd.f32 %v1066, %v1077
        %v1095 = vmax.f32 %v1079, 0.0
        %v1096 = vmax.f32 %v1080, 0.0
        %v1097 = vmax.f32 %v1081, 0.0
        %v1098 = vmax.f32 %v1082, 0.0
        %v1099 = vmax.f32 %v1083, 0.0
        %v1100 = vmax.f32 %v1084, 0.0
        %v1101 = vmax.f32 %v1085, 0.0
        %v1102 = vmax.f32 %v1086, 0.0
        %v1103 = vmax.f32 %v1087, 0.0
        %v1104 = vmax.f32 %v1088, 0.0
        %v1105 = vmax.f32 %v1089, 0.0
        %v1106 = vmax.f32 %v1090, 0.0
        %v1107 = vmax.f32 %v1091, 0.0
        %v1108 = vmax.f32 %v1092, 0.0
        %v1109 = vmax.f32 %v1093, 0.0
        %v1110 = vmax.f32 %v1094, 0.0
        %1111 = vst [vmem:[%s406] sm:$0xff] %v1095
        %1112 = vst [vmem:[%s406 + $0x8] sm:$0xff] %v1096
        %1113 = vst [vmem:[%s406 + $0x10] sm:$0xff] %v1103
        %1114 = vst [vmem:[%s406 + $0x18] sm:$0xff] %v1104
        %s1115 = scalar_lea.vmem %s406, 32 [#allocation5]
        %1116 = vst [vmem:[%s1115] sm:$0xff] %v1097
        %1117 = vst [vmem:[%s1115 + $0x8] sm:$0xff] %v1098
        %1118 = vst [vmem:[%s1115 + $0x10] sm:$0xff] %v1105
        %1119 = vst [vmem:[%s1115 + $0x18] sm:$0xff] %v1106
        %s1120 = scalar_lea.vmem %s406, 64 [#allocation5]
        %1121 = vst [vmem:[%s1120] sm:$0xff] %v1099
        %1122 = vst [vmem:[%s1120 + $0x8] sm:$0xff] %v1100
        %1123 = vst [vmem:[%s1120 + $0x10] sm:$0xff] %v1107
        %1124 = vst [vmem:[%s1120 + $0x18] sm:$0xff] %v1108
        %s1125 = scalar_lea.vmem %s406, 96 [#allocation5]
        %1126 = vst [vmem:[%s1125] sm:$0xff] %v1101
        %1127 = vst [vmem:[%s1125 + $0x8] sm:$0xff] %v1102
        %1128 = vst [vmem:[%s1125 + $0x10] sm:$0xff] %v1109
        %1129 = vst [vmem:[%s1125 + $0x18] sm:$0xff] %v1110
        %s1130 = sand.u32 %s272, 1
        %s1131 = scalar_lea.sflag [#allocation4], %s1130
        %s1132 = sand.u32 %s272, 1
        %s1133 = smul.addr %s1132, 128
        %s1134 = scalar_lea.vmem [#allocation5], %s1133
        // Predicated region
        $region69: #{tpu_custom_call.1} parent=63 // pred_check
          %p1135 = pneg %p282
        $region70: #{tpu_custom_call.1} parent=63 // pred_check_branch
          %1137 = sbr.rel (%p1135) target = $region72
        $region71: #{tpu_custom_call.1} parent=63 // pred_region
          %1139 = vsyncadd %s1131, 0
          %s1140 = smul.addr %s28, 16
          %s1141 = smul.addr %s1140, 8
          %s1142 = scalar_lea.hbm %s11, %s1141
          %s1143 = sshll.u32 %s1134, 4
          %s1144 = int_to_ptr.vmem [resolvable:$true] %s1143
          %s1145 = sshll.u32 %s1142, 4
          %s1146 = int_to_ptr.hbm [resolvable:$true] %s1145
          %1151 = dma.vmem_to_hbm [thread:$0]  %s1144, 2048, %s1146, %s1131, 256, 256, 16
        $region72: #{tpu_custom_call.1} parent=63 // pred_fallthru
          _
      $region64: #{tpu_custom_call.1} parent=5 // pred_fallthru
        _
      %p1152 = scmp.le.s32.totalorder 2, %s23
      // Predicated region
      $region73: #{tpu_custom_call.1} parent=5 // pred_check
        %p1153 = pneg %p1152
      $region74: #{tpu_custom_call.1} parent=5 // pred_check_branch
        %1155 = sbr.rel (%p1153) target = $region76
      $region75: #{tpu_custom_call.1} parent=5 // pred_region
        %s1156 = ssub.s32 %s23, 2
        // Predicated region
        $region77: #{tpu_custom_call.1} parent=75 // pred_check
          %p1157 = pneg %p288
        $region78: #{tpu_custom_call.1} parent=75 // pred_check_branch
          %1159 = sbr.rel (%p1157) target = $region80
        $region79: #{tpu_custom_call.1} parent=75 // pred_region
          %s1160 = sand.u32 %s273, 1
          %s1161 = scalar_lea.sflag [#allocation4], %s1160
          %s1162 = sand.u32 %s273, 1
          %s1163 = smul.addr %s1162, 128
          %s1164 = scalar_lea.vmem [#allocation5], %s1163
          %1166 = dma.done %s1161, 2048
        $region80: #{tpu_custom_call.1} parent=75 // pred_fallthru
          _
      $region76: #{tpu_custom_call.1} parent=5 // pred_fallthru
        _
    $region6: #{tpu_custom_call.1} parent=1 // loop_footer
      %s27 = sadd.s32 1, %s23
    $region7: #{tpu_custom_call.1} parent=1 // loop_footer_branch
      %22 = sbr.rel target = $region3
    $region8: #{tpu_custom_call.1} parent=1 // loop_exit
      _
    %1167 = vsyncpa [#allocation3], 1
    %s1168 = scalar_lea.sflag [#allocation3], 1
    %1169 = vsyncpa %s1168, 1
    %1170 = vsyncpa [#allocation4], 1
    %s1171 = scalar_lea.sflag [#allocation4], 1
    %1172 = vsyncpa %s1171, 1

</llo_original>
